<compile_context>
chip_gen: v6e
topology: v6e:2x2x1
jax: 0.10.0
libtpu: 0.0.40
codegen_flags: <defaults>
</compile_context>

<pallas_src>
import jax
import jax.numpy as jnp
from jax.experimental import pallas as pl
from jax.experimental.pallas import tpu as pltpu

NULL, START, END = 0, 1, 2


# ----------------------------------------------------------------------------
# Pallas kernel 1: 2-layer LSTM over the full sequence in a single grid step.
# Inputs/outputs are flat time-major 2-D slabs: row t*N + n  <->  (time t, sample n).
# ----------------------------------------------------------------------------
def make_lstm2_kernel(T, N, H):
    f32 = jnp.float32

    def gates(z):
        i = jax.nn.sigmoid(z[:, 0 * H:1 * H])
        f = jax.nn.sigmoid(z[:, 1 * H:2 * H])
        g = jnp.tanh(z[:, 2 * H:3 * H])
        o = jax.nn.sigmoid(z[:, 3 * H:4 * H])
        return i, f, g, o

    def kernel(x_ref, wih0_ref, whh0_ref, b0_ref, wih1_ref, whh1_ref, b1_ref,
               out_ref, z0_scr, z1_scr, h0_scr):
        # ---- layer 0: hoisted input projection, one (T*N, Din)@(Din, 4H) GEMM ----
        z0_scr[...] = jnp.dot(x_ref[...], wih0_ref[...],
                              preferred_element_type=f32)

        whh0 = whh0_ref[...]
        b0 = b0_ref[...]          # (1,4H) or (N,4H) — broadcasts against (N,4H)
        h = jnp.zeros((N, H), f32)
        c = jnp.zeros((N, H), f32)
        # fully unrolled serial recurrence: only h @ Whh on the critical path
        for t in range(T):
            rows = pl.ds(t * N, N)
            z = z0_scr[rows, :] + b0 + jnp.dot(h, whh0, preferred_element_type=f32)
            i, f, g, o = gates(z)
            c = f * c + i * g
            h = o * jnp.tanh(c)
            h0_scr[rows, :] = h

        # ---- layer 1: hoisted input projection over the whole layer-0 output ----
        z1_scr[...] = jnp.dot(h0_scr[...], wih1_ref[...],
                              preferred_element_type=f32)

        whh1 = whh1_ref[...]
        b1 = b1_ref[...]
        h = jnp.zeros((N, H), f32)
        c = jnp.zeros((N, H), f32)
        for t in range(T):
            rows = pl.ds(t * N, N)
            z = z1_scr[rows, :] + b1 + jnp.dot(h, whh1, preferred_element_type=f32)
            i, f, g, o = gates(z)
            c = f * c + i * g
            h = o * jnp.tanh(c)
            out_ref[rows, :] = h

    return kernel


def lstm2_forward(x2d, T, N, wih0, whh0, b0, wih1, whh1, b1):
    """2-layer LSTM, zero init state.

    x2d: (T*N, Din) f32, time-major rows -> (T*N, H) f32 (same row ordering).
    """
    TN, Din = x2d.shape
    H = whh0.shape[0]
    kernel = make_lstm2_kernel(T, N, H)
    return pl.pallas_call(
        kernel,
        out_shape=jax.ShapeDtypeStruct((TN, H), jnp.float32),
        grid_spec=pltpu.PrefetchScalarGridSpec(
            num_scalar_prefetch=0,
            grid=(1,),
            in_specs=[
                pl.BlockSpec((TN, Din), lambda i: (0, 0)),
                pl.BlockSpec((Din, 4 * H), lambda i: (0, 0)),
                pl.BlockSpec((H, 4 * H), lambda i: (0, 0)),
                pl.BlockSpec(tuple(b0.shape), lambda i: (0, 0)),
                pl.BlockSpec((H, 4 * H), lambda i: (0, 0)),
                pl.BlockSpec((H, 4 * H), lambda i: (0, 0)),
                pl.BlockSpec(tuple(b1.shape), lambda i: (0, 0)),
            ],
            out_specs=pl.BlockSpec((TN, H), lambda i: (0, 0)),
            scratch_shapes=[
                pltpu.VMEM((TN, 4 * H), jnp.float32),   # hoisted z, layer 0
                pltpu.VMEM((TN, 4 * H), jnp.float32),   # hoisted z, layer 1
                pltpu.VMEM((TN, H), jnp.float32),       # layer-0 outputs
            ],
        ),
        compiler_params=pltpu.CompilerParams(
            dimension_semantics=("arbitrary",)),
    )(x2d, wih0, whh0, b0, wih1, whh1, b1)


# ----------------------------------------------------------------------------
# Pallas kernel 2: decoder linear + masked (shifted) cross-entropy.
# Tiled over the vocab axis with an online logsumexp; returns the scalar loss.
# ----------------------------------------------------------------------------
def make_loss_kernel(TV):
    def kernel(h_ref, w_ref, b_ref, tgt_ref, mask_ref, out_ref,
               m_scr, l_scr, t_scr):
        v = pl.program_id(0)
        nv = pl.num_programs(0)

        @pl.when(v == 0)
        def _():
            m_scr[...] = jnp.full_like(m_scr, -jnp.inf)
            l_scr[...] = jnp.zeros_like(l_scr)
            t_scr[...] = jnp.zeros_like(t_scr)

        logits = (jnp.dot(h_ref[...], w_ref[...],
                          preferred_element_type=jnp.float32)
                  + b_ref[...])                                     # (M, TV)

        # online logsumexp over the vocab axis
        m_prev = m_scr[...]
        m_new = jnp.maximum(m_prev, jnp.max(logits, axis=-1, keepdims=True))
        l_scr[...] = (l_scr[...] * jnp.exp(m_prev - m_new)
                      + jnp.sum(jnp.exp(logits - m_new), axis=-1, keepdims=True))
        m_scr[...] = m_new

        # target logit (the target column lands in exactly one vocab tile)
        col = jax.lax.broadcasted_iota(jnp.int32, logits.shape, 1) + v * TV
        onehot = (col == tgt_ref[...]).astype(jnp.float32)          # (M, TV)
        t_scr[...] = t_scr[...] + jnp.sum(logits * onehot, axis=-1, keepdims=True)

        @pl.when(v == nv - 1)
        def _():
            lse = m_scr[...] + jnp.log(l_scr[...])                  # (M, 1)
            nll = lse - t_scr[...]                                  # (M, 1)
            mask = mask_ref[...]
            s = jnp.sum(nll * mask, keepdims=True)                  # (1, 1)
            cnt = jnp.sum(mask, keepdims=True)                      # (1, 1)
            # NOTE: matches the reference exactly — no guard if cnt == 0.
            out_ref[...] = s / cnt

    return kernel


def masked_xent(h2d, w, b, tgt, mask):
    """mean over masked rows of -log softmax(h @ w + b)[tgt]. Returns scalar."""
    M, H = h2d.shape
    V = w.shape[1]
    tv = V
    for cand in (512, 256, 128):
        if V % cand == 0:
            tv = cand
            break
    nv = V // tv
    out = pl.pallas_call(
        make_loss_kernel(tv),
        out_shape=jax.ShapeDtypeStruct((1, 1), jnp.float32),
        grid_spec=pltpu.PrefetchScalarGridSpec(
            num_scalar_prefetch=0,
            grid=(nv,),
            in_specs=[
                pl.BlockSpec((M, H), lambda v: (0, 0)),
                pl.BlockSpec((H, tv), lambda v: (0, v)),
                pl.BlockSpec((1, tv), lambda v: (0, v)),
                pl.BlockSpec((M, 1), lambda v: (0, 0)),
                pl.BlockSpec((M, 1), lambda v: (0, 0)),
            ],
            out_specs=pl.BlockSpec((1, 1), lambda v: (0, 0)),
            scratch_shapes=[pltpu.VMEM((M, 1), jnp.float32)] * 3,
        ),
        compiler_params=pltpu.CompilerParams(
            dimension_semantics=("arbitrary",)),
    )(h2d, w, b, tgt, mask)
    return out[0, 0]


# ----------------------------------------------------------------------------
# Full Seq2Seq forward (encoder -> decoder -> compute_loss), Pallas kernels.
# ----------------------------------------------------------------------------
def seq2seq_forward(p, x, y):
    N, T_in = x.shape
    _, T_out = y.shape
    H = p["enc_whh0"].shape[0]
    D = p["enc_embed"].shape[1]

    # --- encoder: before_rnn idx + embed (time-major) + 2-layer LSTM + gather ---
    cond = (x[:, :-1] != NULL) & (x[:, 1:] == NULL)
    idx = jnp.where(jnp.any(cond, axis=1), jnp.argmax(cond, axis=1), T_in - 1)
    x_r = jnp.where(x == NULL, 0, x)                       # replace=0 (no-op: NULL==0)
    emb_tm = jnp.take(p["enc_embed"], x_r.T, axis=0)       # (T_in, N, D), no transpose
    enc2d = lstm2_forward(emb_tm.reshape(T_in * N, D), T_in, N,
                          p["enc_wih0"], p["enc_whh0"], p["enc_b0"],
                          p["enc_wih1"], p["enc_whh1"], p["enc_b1"])  # (T_in*N, H)
    enc_out = enc2d.reshape(T_in, N, H)
    encoded = enc_out[idx, jnp.arange(N)]                  # (N, H)

    # --- decoder: fold the constant "encoded" half of the concat input into a
    #     per-sample layer-0 bias; feed only the time-varying y embedding. ---
    y_r = jnp.where(y == NULL, 0, y)
    y_emb_tm = jnp.take(p["dec_embed"], y_r.T, axis=0)     # (T_out, N, D)
    b0_eff = p["dec_b0"] + encoded @ p["dec_wih0"][:H, :]  # (N, 4H)
    wih0_y = p["dec_wih0"][H:, :]                          # (D, 4H)
    dec2d = lstm2_forward(y_emb_tm.reshape(T_out * N, D), T_out, N,
                          wih0_y, p["dec_whh0"], b0_eff,
                          p["dec_wih1"], p["dec_whh1"], p["dec_b1"])  # (T_out*N, H)

    # --- compute_loss: logits at (n, t) predict y[n, t+1] where y[n, t+1] != NULL.
    #     Rows stay time-major (same ordering as dec2d); CE mean is order-invariant.
    tgt = jnp.concatenate([y[:, 1:], jnp.zeros((N, 1), y.dtype)], axis=1)  # (N, T_out)
    mask = (tgt != NULL)
    tgt_tm = tgt.T.reshape(T_out * N, 1).astype(jnp.int32)
    mask_tm = mask.T.reshape(T_out * N, 1).astype(jnp.float32)
    return masked_xent(dec2d, p["lin_w"], p["lin_b"], tgt_tm, mask_tm)


# ----------------------------------------------------------------------------
# Pure-JAX reference (independent decomposition, mirrors the PyTorch module).
# ----------------------------------------------------------------------------
def _lstm2_scan_ref(x_tnd, wih0, whh0, b0, wih1, whh1, b1):
    H = whh0.shape[0]
    N = x_tnd.shape[1]

    def cell(xt, h, c, wih, whh, b):
        z = xt @ wih + h @ whh + b
        i = jax.nn.sigmoid(z[:, :H]); f = jax.nn.sigmoid(z[:, H:2 * H])
        g = jnp.tanh(z[:, 2 * H:3 * H]); o = jax.nn.sigmoid(z[:, 3 * H:])
        c2 = f * c + i * g
        return o * jnp.tanh(c2), c2

    def step(carry, xt):
        h0, c0, h1, c1 = carry
        h0, c0 = cell(xt, h0, c0, wih0, whh0, b0)
        h1, c1 = cell(h0, h1, c1, wih1, whh1, b1)
        return (h0, c0, h1, c1), h1

    z = jnp.zeros((N, H), jnp.float32)
    _, out = jax.lax.scan(step, (z, z, z, z), x_tnd)
    return out


def seq2seq_ref(p, x, y):
    N, T_in = x.shape
    _, T_out = y.shape
    H = p["enc_whh0"].shape[0]

    cond = (x[:, :-1] != NULL) & (x[:, 1:] == NULL)
    idx = jnp.where(jnp.any(cond, axis=1), jnp.argmax(cond, axis=1), T_in - 1)
    emb = jnp.take(p["enc_embed"], jnp.where(x == NULL, 0, x), axis=0)   # (N,T,D)
    enc_out = _lstm2_scan_ref(jnp.transpose(emb, (1, 0, 2)),
                              p["enc_wih0"], p["enc_whh0"], p["enc_b0"],
                              p["enc_wih1"], p["enc_whh1"], p["enc_b1"])  # (T,N,H)
    encoded = enc_out[idx, jnp.arange(N)]                                 # (N,H)

    y_emb = jnp.take(p["dec_embed"], jnp.where(y == NULL, 0, y), axis=0)  # (N,T,D)
    enc_rep = jnp.broadcast_to(encoded[:, None, :], (N, T_out, H))
    rnn_in = jnp.concatenate([enc_rep, y_emb], axis=2)
    dec_out = _lstm2_scan_ref(jnp.transpose(rnn_in, (1, 0, 2)),
                              p["dec_wih0"], p["dec_whh0"], p["dec_b0"],
                              p["dec_wih1"], p["dec_whh1"], p["dec_b1"])  # (T,N,H)
    dec2d = jnp.transpose(dec_out, (1, 0, 2)).reshape(N * T_out, H)

    logits = dec2d @ p["lin_w"] + p["lin_b"]
    tgt = jnp.concatenate([y[:, 1:], jnp.zeros((N, 1), y.dtype)], axis=1)
    mask = (tgt != NULL).astype(jnp.float32).reshape(-1)
    logp = jax.nn.log_softmax(logits, axis=-1)
    nll = -jnp.take_along_axis(logp, tgt.reshape(-1, 1).astype(jnp.int32), axis=1)[:, 0]
    return jnp.sum(nll * mask) / jnp.sum(mask)


# ----------------------------------------------------------------------------
# Deterministic parameter init (synthetic; module shapes scaled down).
# ----------------------------------------------------------------------------
def init_params(key, V_in, V_out, D, H):
    ks = jax.random.split(key, 20)
    scale = 0.08

    def n(k, shp):
        return scale * jax.random.normal(k, shp, jnp.float32)

    p = {}
    p["enc_embed"] = n(ks[0], (V_in, D))
    p["dec_embed"] = n(ks[1], (V_out, D))
    # encoder LSTM (2 layers, input dim D); biases = b_ih + b_hh
    p["enc_wih0"] = n(ks[2], (D, 4 * H))
    p["enc_whh0"] = n(ks[3], (H, 4 * H))
    p["enc_b0"] = n(ks[4], (1, 4 * H)) + n(ks[5], (1, 4 * H))
    p["enc_wih1"] = n(ks[6], (H, 4 * H))
    p["enc_whh1"] = n(ks[7], (H, 4 * H))
    p["enc_b1"] = n(ks[8], (1, 4 * H)) + n(ks[9], (1, 4 * H))
    # decoder LSTM (2 layers, input dim H + D; rows ordered [encoded; y_emb])
    p["dec_wih0"] = n(ks[10], (H + D, 4 * H))
    p["dec_whh0"] = n(ks[11], (H, 4 * H))
    p["dec_b0"] = n(ks[12], (1, 4 * H)) + n(ks[13], (1, 4 * H))
    p["dec_wih1"] = n(ks[14], (H, 4 * H))
    p["dec_whh1"] = n(ks[15], (H, 4 * H))
    p["dec_b1"] = n(ks[16], (1, 4 * H)) + n(ks[17], (1, 4 * H))
    # decoder linear (stored as (H, V_out))
    p["lin_w"] = n(ks[18], (H, V_out))
    p["lin_b"] = n(ks[19], (1, V_out))
    return p


if __name__ == "__main__":
    # Small shapes consistent with the module: vocab=32, wordvec=32, hidden=32,
    # 2 LSTM layers, batch=2, T_in=T_out=8.
    V_in = V_out = 32
    D, H = 32, 32
    N, T_in, T_out = 2, 8, 8

    key = jax.random.PRNGKey(0)
    kp, kx, ky = jax.random.split(key, 3)
    params = init_params(kp, V_in, V_out, D, H)

    # Deterministic token sequences: left-aligned, right-padded with NULL(=0);
    # y starts with START(=1) and contains END(=2).
    x = jax.random.randint(kx, (N, T_in), 3, V_in, dtype=jnp.int32)
    x = x * jnp.array([[1] * 5 + [0] * 3, [1] * 8], dtype=jnp.int32)
    y = jax.random.randint(ky, (N, T_out), 3, V_out, dtype=jnp.int32)
    y = y.at[:, 0].set(START)
    y = y.at[0, 4].set(END)
    y = y * jnp.array([[1] * 5 + [0] * 3, [1] * 6 + [0] * 2], dtype=jnp.int32)
    y = y.at[1, 5].set(END)

    loss = seq2seq_forward(params, x, y)
    loss = jax.block_until_ready(loss)

    # Cross-check against an independent pure-JAX reference of the module.
    loss_ref = seq2seq_ref(params, x, y)
    assert bool(jnp.isfinite(loss)), loss
    assert jnp.allclose(loss, loss_ref, rtol=1e-3, atol=1e-3), (loss, loss_ref)

    print("KERNEL_OK")
</pallas_src>

<mosaic_0001>
module attributes {stable_mosaic.version = 11 : i64} {
  func.func @kernel(%arg0: i32, %arg1: memref<16x32xf32, #tpu.memory_space<vmem>>, %arg2: memref<32x128xf32, #tpu.memory_space<vmem>>, %arg3: memref<32x128xf32, #tpu.memory_space<vmem>>, %arg4: memref<1x128xf32, #tpu.memory_space<vmem>>, %arg5: memref<32x128xf32, #tpu.memory_space<vmem>>, %arg6: memref<32x128xf32, #tpu.memory_space<vmem>>, %arg7: memref<1x128xf32, #tpu.memory_space<vmem>>, %arg8: memref<16x32xf32, #tpu.memory_space<vmem>>, %arg9: memref<16x128xf32, #tpu.memory_space<vmem>>, %arg10: memref<16x128xf32, #tpu.memory_space<vmem>>, %arg11: memref<16x32xf32, #tpu.memory_space<vmem>>) attributes {dimension_semantics = [#tpu.dimension_semantics<arbitrary>], iteration_bounds = array<i64: 1>, scalar_prefetch = 0 : i64, scratch_operands = 3 : i64, tpu.core_type = #tpu.core_type<tc>, window_params = [{pipeline_mode = #tpu.pipeline_mode<synchronous>, transform_indices = @transform_0, window_bounds = array<i64: 16, 32>}, {pipeline_mode = #tpu.pipeline_mode<synchronous>, transform_indices = @transform_1, window_bounds = array<i64: 32, 128>}, {pipeline_mode = #tpu.pipeline_mode<synchronous>, transform_indices = @transform_2, window_bounds = array<i64: 32, 128>}, {pipeline_mode = #tpu.pipeline_mode<synchronous>, transform_indices = @transform_3, window_bounds = array<i64: 1, 128>}, {pipeline_mode = #tpu.pipeline_mode<synchronous>, transform_indices = @transform_4, window_bounds = array<i64: 32, 128>}, {pipeline_mode = #tpu.pipeline_mode<synchronous>, transform_indices = @transform_5, window_bounds = array<i64: 32, 128>}, {pipeline_mode = #tpu.pipeline_mode<synchronous>, transform_indices = @transform_6, window_bounds = array<i64: 1, 128>}, {pipeline_mode = #tpu.pipeline_mode<synchronous>, transform_indices = @transform_7, window_bounds = array<i64: 16, 32>}]} {
    %c0 = arith.constant 0 : index
    %c0_0 = arith.constant 0 : index
    %0 = vector.load %arg1[%c0, %c0_0] : memref<16x32xf32, #tpu.memory_space<vmem>>, vector<16x32xf32>
    %c0_1 = arith.constant 0 : index
    %c0_2 = arith.constant 0 : index
    %1 = vector.load %arg2[%c0_1, %c0_2] : memref<32x128xf32, #tpu.memory_space<vmem>>, vector<32x128xf32>
    %cst = arith.constant dense<0.000000e+00> : vector<16x128xf32>
    %2 = tpu.matmul %0, %1, %cst {dimension_numbers = #tpu.dot_dimension_numbers<[1], [0], [0], [1], [0, 0, 1, 1], [], []>} : vector<16x32xf32>, vector<32x128xf32>, vector<16x128xf32> -> vector<16x128xf32>
    %c0_3 = arith.constant 0 : index
    %c0_4 = arith.constant 0 : index
    %3 = vector.load %arg9[%c0_3, %c0_4] : memref<16x128xf32, #tpu.memory_space<vmem>>, vector<16x128xf32>
    tpu.vector_store %arg9[%c0_3, %c0_4], %2 {strides = array<i32>} : memref<16x128xf32, #tpu.memory_space<vmem>>, vector<16x128xf32>,
    %c0_5 = arith.constant 0 : index
    %c0_6 = arith.constant 0 : index
    %4 = vector.load %arg3[%c0_5, %c0_6] : memref<32x128xf32, #tpu.memory_space<vmem>>, vector<32x128xf32>
    %c0_7 = arith.constant 0 : index
    %c0_8 = arith.constant 0 : index
    %5 = vector.load %arg4[%c0_7, %c0_8] : memref<1x128xf32, #tpu.memory_space<vmem>>, vector<1x128xf32>
    %cst_9 = arith.constant 0.000000e+00 : f32
    %6 = vector.broadcast %cst_9 : f32 to vector<2x32xf32>
    %cst_10 = arith.constant 0.000000e+00 : f32
    %7 = vector.broadcast %cst_10 : f32 to vector<2x32xf32>
    %c0_11 = arith.constant 0 : index
    %c0_12 = arith.constant 0 : index
    %8 = vector.load %arg9[%c0_11, %c0_12] : memref<16x128xf32, #tpu.memory_space<vmem>>, vector<2x128xf32>
    %9 = vector.broadcast %5 : vector<1x128xf32> to vector<2x128xf32>
    %10 = arith.addf %8, %9 : vector<2x128xf32>
    %cst_13 = arith.constant dense<0.000000e+00> : vector<2x128xf32>
    %11 = tpu.matmul %6, %4, %cst_13 {dimension_numbers = #tpu.dot_dimension_numbers<[1], [0], [0], [1], [0, 0, 1, 1], [], []>} : vector<2x32xf32>, vector<32x128xf32>, vector<2x128xf32> -> vector<2x128xf32>
    %12 = arith.addf %10, %11 : vector<2x128xf32>
    %13 = vector.extract_strided_slice %12 {offsets = [0, 0], sizes = [2, 32], strides = [1, 1]} : vector<2x128xf32> to vector<2x32xf32>
    %14 = arith.negf %13 : vector<2x32xf32>
    %15 = math.exp %14 : vector<2x32xf32>
    %cst_14 = arith.constant 1.000000e+00 : f32
    %16 = vector.broadcast %cst_14 : f32 to vector<2x32xf32>
    %17 = arith.addf %16, %15 : vector<2x32xf32>
    %18 = arith.divf %16, %17 : vector<2x32xf32>
    %19 = vector.extract_strided_slice %12 {offsets = [0, 32], sizes = [2, 32], strides = [1, 1]} : vector<2x128xf32> to vector<2x32xf32>
    %20 = arith.negf %19 : vector<2x32xf32>
    %21 = math.exp %20 : vector<2x32xf32>
    %cst_15 = arith.constant 1.000000e+00 : f32
    %22 = vector.broadcast %cst_15 : f32 to vector<2x32xf32>
    %23 = arith.addf %22, %21 : vector<2x32xf32>
    %24 = arith.divf %22, %23 : vector<2x32xf32>
    %25 = vector.extract_strided_slice %12 {offsets = [0, 64], sizes = [2, 32], strides = [1, 1]} : vector<2x128xf32> to vector<2x32xf32>
    %26 = math.tanh %25 : vector<2x32xf32>
    %27 = vector.extract_strided_slice %12 {offsets = [0, 96], sizes = [2, 32], strides = [1, 1]} : vector<2x128xf32> to vector<2x32xf32>
    %28 = arith.negf %27 : vector<2x32xf32>
    %29 = math.exp %28 : vector<2x32xf32>
    %cst_16 = arith.constant 1.000000e+00 : f32
    %30 = vector.broadcast %cst_16 : f32 to vector<2x32xf32>
    %31 = arith.addf %30, %29 : vector<2x32xf32>
    %32 = arith.divf %30, %31 : vector<2x32xf32>
    %33 = arith.mulf %24, %7 : vector<2x32xf32>
    %34 = arith.mulf %18, %26 : vector<2x32xf32>
    %35 = arith.addf %33, %34 : vector<2x32xf32>
    %36 = math.tanh %35 : vector<2x32xf32>
    %37 = arith.mulf %32, %36 : vector<2x32xf32>
    %c0_17 = arith.constant 0 : index
    %c0_18 = arith.constant 0 : index
    %38 = vector.load %arg11[%c0_17, %c0_18] : memref<16x32xf32, #tpu.memory_space<vmem>>, vector<2x32xf32>
    tpu.vector_store %arg11[%c0_17, %c0_18], %37 {strides = array<i32>} : memref<16x32xf32, #tpu.memory_space<vmem>>, vector<2x32xf32>,
    %c2 = arith.constant 2 : index
    %c0_19 = arith.constant 0 : index
    %39 = vector.load %arg9[%c2, %c0_19] : memref<16x128xf32, #tpu.memory_space<vmem>>, vector<2x128xf32>
    %40 = vector.broadcast %5 : vector<1x128xf32> to vector<2x128xf32>
    %41 = arith.addf %39, %40 : vector<2x128xf32>
    %cst_20 = arith.constant dense<0.000000e+00> : vector<2x128xf32>
    %42 = tpu.matmul %37, %4, %cst_20 {dimension_numbers = #tpu.dot_dimension_numbers<[1], [0], [0], [1], [0, 0, 1, 1], [], []>} : vector<2x32xf32>, vector<32x128xf32>, vector<2x128xf32> -> vector<2x128xf32>
    %43 = arith.addf %41, %42 : vector<2x128xf32>
    %44 = vector.extract_strided_slice %43 {offsets = [0, 0], sizes = [2, 32], strides = [1, 1]} : vector<2x128xf32> to vector<2x32xf32>
    %45 = arith.negf %44 : vector<2x32xf32>
    %46 = math.exp %45 : vector<2x32xf32>
    %cst_21 = arith.constant 1.000000e+00 : f32
    %47 = vector.broadcast %cst_21 : f32 to vector<2x32xf32>
    %48 = arith.addf %47, %46 : vector<2x32xf32>
    %49 = arith.divf %47, %48 : vector<2x32xf32>
    %50 = vector.extract_strided_slice %43 {offsets = [0, 32], sizes = [2, 32], strides = [1, 1]} : vector<2x128xf32> to vector<2x32xf32>
    %51 = arith.negf %50 : vector<2x32xf32>
    %52 = math.exp %51 : vector<2x32xf32>
    %cst_22 = arith.constant 1.000000e+00 : f32
    %53 = vector.broadcast %cst_22 : f32 to vector<2x32xf32>
    %54 = arith.addf %53, %52 : vector<2x32xf32>
    %55 = arith.divf %53, %54 : vector<2x32xf32>
    %56 = vector.extract_strided_slice %43 {offsets = [0, 64], sizes = [2, 32], strides = [1, 1]} : vector<2x128xf32> to vector<2x32xf32>
    %57 = math.tanh %56 : vector<2x32xf32>
    %58 = vector.extract_strided_slice %43 {offsets = [0, 96], sizes = [2, 32], strides = [1, 1]} : vector<2x128xf32> to vector<2x32xf32>
    %59 = arith.negf %58 : vector<2x32xf32>
    %60 = math.exp %59 : vector<2x32xf32>
    %cst_23 = arith.constant 1.000000e+00 : f32
    %61 = vector.broadcast %cst_23 : f32 to vector<2x32xf32>
    %62 = arith.addf %61, %60 : vector<2x32xf32>
    %63 = arith.divf %61, %62 : vector<2x32xf32>
    %64 = arith.mulf %55, %35 : vector<2x32xf32>
    %65 = arith.mulf %49, %57 : vector<2x32xf32>
    %66 = arith.addf %64, %65 : vector<2x32xf32>
    %67 = math.tanh %66 : vector<2x32xf32>
    %68 = arith.mulf %63, %67 : vector<2x32xf32>
    %c2_24 = arith.constant 2 : index
    %c0_25 = arith.constant 0 : index
    %69 = vector.load %arg11[%c2_24, %c0_25] : memref<16x32xf32, #tpu.memory_space<vmem>>, vector<2x32xf32>
    tpu.vector_store %arg11[%c2_24, %c0_25], %68 {strides = array<i32>} : memref<16x32xf32, #tpu.memory_space<vmem>>, vector<2x32xf32>,
    %c4 = arith.constant 4 : index
    %c0_26 = arith.constant 0 : index
    %70 = vector.load %arg9[%c4, %c0_26] : memref<16x128xf32, #tpu.memory_space<vmem>>, vector<2x128xf32>
    %71 = vector.broadcast %5 : vector<1x128xf32> to vector<2x128xf32>
    %72 = arith.addf %70, %71 : vector<2x128xf32>
    %cst_27 = arith.constant dense<0.000000e+00> : vector<2x128xf32>
    %73 = tpu.matmul %68, %4, %cst_27 {dimension_numbers = #tpu.dot_dimension_numbers<[1], [0], [0], [1], [0, 0, 1, 1], [], []>} : vector<2x32xf32>, vector<32x128xf32>, vector<2x128xf32> -> vector<2x128xf32>
    %74 = arith.addf %72, %73 : vector<2x128xf32>
    %75 = vector.extract_strided_slice %74 {offsets = [0, 0], sizes = [2, 32], strides = [1, 1]} : vector<2x128xf32> to vector<2x32xf32>
    %76 = arith.negf %75 : vector<2x32xf32>
    %77 = math.exp %76 : vector<2x32xf32>
    %cst_28 = arith.constant 1.000000e+00 : f32
    %78 = vector.broadcast %cst_28 : f32 to vector<2x32xf32>
    %79 = arith.addf %78, %77 : vector<2x32xf32>
    %80 = arith.divf %78, %79 : vector<2x32xf32>
    %81 = vector.extract_strided_slice %74 {offsets = [0, 32], sizes = [2, 32], strides = [1, 1]} : vector<2x128xf32> to vector<2x32xf32>
    %82 = arith.negf %81 : vector<2x32xf32>
    %83 = math.exp %82 : vector<2x32xf32>
    %cst_29 = arith.constant 1.000000e+00 : f32
    %84 = vector.broadcast %cst_29 : f32 to vector<2x32xf32>
    %85 = arith.addf %84, %83 : vector<2x32xf32>
    %86 = arith.divf %84, %85 : vector<2x32xf32>
    %87 = vector.extract_strided_slice %74 {offsets = [0, 64], sizes = [2, 32], strides = [1, 1]} : vector<2x128xf32> to vector<2x32xf32>
    %88 = math.tanh %87 : vector<2x32xf32>
    %89 = vector.extract_strided_slice %74 {offsets = [0, 96], sizes = [2, 32], strides = [1, 1]} : vector<2x128xf32> to vector<2x32xf32>
    %90 = arith.negf %89 : vector<2x32xf32>
    %91 = math.exp %90 : vector<2x32xf32>
    %cst_30 = arith.constant 1.000000e+00 : f32
    %92 = vector.broadcast %cst_30 : f32 to vector<2x32xf32>
    %93 = arith.addf %92, %91 : vector<2x32xf32>
    %94 = arith.divf %92, %93 : vector<2x32xf32>
    %95 = arith.mulf %86, %66 : vector<2x32xf32>
    %96 = arith.mulf %80, %88 : vector<2x32xf32>
    %97 = arith.addf %95, %96 : vector<2x32xf32>
    %98 = math.tanh %97 : vector<2x32xf32>
    %99 = arith.mulf %94, %98 : vector<2x32xf32>
    %c4_31 = arith.constant 4 : index
    %c0_32 = arith.constant 0 : index
    %100 = vector.load %arg11[%c4_31, %c0_32] : memref<16x32xf32, #tpu.memory_space<vmem>>, vector<2x32xf32>
    tpu.vector_store %arg11[%c4_31, %c0_32], %99 {strides = array<i32>} : memref<16x32xf32, #tpu.memory_space<vmem>>, vector<2x32xf32>,
    %c6 = arith.constant 6 : index
    %c0_33 = arith.constant 0 : index
    %101 = vector.load %arg9[%c6, %c0_33] : memref<16x128xf32, #tpu.memory_space<vmem>>, vector<2x128xf32>
    %102 = vector.broadcast %5 : vector<1x128xf32> to vector<2x128xf32>
    %103 = arith.addf %101, %102 : vector<2x128xf32>
    %cst_34 = arith.constant dense<0.000000e+00> : vector<2x128xf32>
    %104 = tpu.matmul %99, %4, %cst_34 {dimension_numbers = #tpu.dot_dimension_numbers<[1], [0], [0], [1], [0, 0, 1, 1], [], []>} : vector<2x32xf32>, vector<32x128xf32>, vector<2x128xf32> -> vector<2x128xf32>
    %105 = arith.addf %103, %104 : vector<2x128xf32>
    %106 = vector.extract_strided_slice %105 {offsets = [0, 0], sizes = [2, 32], strides = [1, 1]} : vector<2x128xf32> to vector<2x32xf32>
    %107 = arith.negf %106 : vector<2x32xf32>
    %108 = math.exp %107 : vector<2x32xf32>
    %cst_35 = arith.constant 1.000000e+00 : f32
    %109 = vector.broadcast %cst_35 : f32 to vector<2x32xf32>
    %110 = arith.addf %109, %108 : vector<2x32xf32>
    %111 = arith.divf %109, %110 : vector<2x32xf32>
    %112 = vector.extract_strided_slice %105 {offsets = [0, 32], sizes = [2, 32], strides = [1, 1]} : vector<2x128xf32> to vector<2x32xf32>
    %113 = arith.negf %112 : vector<2x32xf32>
    %114 = math.exp %113 : vector<2x32xf32>
    %cst_36 = arith.constant 1.000000e+00 : f32
    %115 = vector.broadcast %cst_36 : f32 to vector<2x32xf32>
    %116 = arith.addf %115, %114 : vector<2x32xf32>
    %117 = arith.divf %115, %116 : vector<2x32xf32>
    %118 = vector.extract_strided_slice %105 {offsets = [0, 64], sizes = [2, 32], strides = [1, 1]} : vector<2x128xf32> to vector<2x32xf32>
    %119 = math.tanh %118 : vector<2x32xf32>
    %120 = vector.extract_strided_slice %105 {offsets = [0, 96], sizes = [2, 32], strides = [1, 1]} : vector<2x128xf32> to vector<2x32xf32>
    %121 = arith.negf %120 : vector<2x32xf32>
    %122 = math.exp %121 : vector<2x32xf32>
    %cst_37 = arith.constant 1.000000e+00 : f32
    %123 = vector.broadcast %cst_37 : f32 to vector<2x32xf32>
    %124 = arith.addf %123, %122 : vector<2x32xf32>
    %125 = arith.divf %123, %124 : vector<2x32xf32>
    %126 = arith.mulf %117, %97 : vector<2x32xf32>
    %127 = arith.mulf %111, %119 : vector<2x32xf32>
    %128 = arith.addf %126, %127 : vector<2x32xf32>
    %129 = math.tanh %128 : vector<2x32xf32>
    %130 = arith.mulf %125, %129 : vector<2x32xf32>
    %c6_38 = arith.constant 6 : index
    %c0_39 = arith.constant 0 : index
    %131 = vector.load %arg11[%c6_38, %c0_39] : memref<16x32xf32, #tpu.memory_space<vmem>>, vector<2x32xf32>
    tpu.vector_store %arg11[%c6_38, %c0_39], %130 {strides = array<i32>} : memref<16x32xf32, #tpu.memory_space<vmem>>, vector<2x32xf32>,
    %c8 = arith.constant 8 : index
    %c0_40 = arith.constant 0 : index
    %132 = vector.load %arg9[%c8, %c0_40] : memref<16x128xf32, #tpu.memory_space<vmem>>, vector<2x128xf32>
    %133 = vector.broadcast %5 : vector<1x128xf32> to vector<2x128xf32>
    %134 = arith.addf %132, %133 : vector<2x128xf32>
    %cst_41 = arith.constant dense<0.000000e+00> : vector<2x128xf32>
    %135 = tpu.matmul %130, %4, %cst_41 {dimension_numbers = #tpu.dot_dimension_numbers<[1], [0], [0], [1], [0, 0, 1, 1], [], []>} : vector<2x32xf32>, vector<32x128xf32>, vector<2x128xf32> -> vector<2x128xf32>
    %136 = arith.addf %134, %135 : vector<2x128xf32>
    %137 = vector.extract_strided_slice %136 {offsets = [0, 0], sizes = [2, 32], strides = [1, 1]} : vector<2x128xf32> to vector<2x32xf32>
    %138 = arith.negf %137 : vector<2x32xf32>
    %139 = math.exp %138 : vector<2x32xf32>
    %cst_42 = arith.constant 1.000000e+00 : f32
    %140 = vector.broadcast %cst_42 : f32 to vector<2x32xf32>
    %141 = arith.addf %140, %139 : vector<2x32xf32>
    %142 = arith.divf %140, %141 : vector<2x32xf32>
    %143 = vector.extract_strided_slice %136 {offsets = [0, 32], sizes = [2, 32], strides = [1, 1]} : vector<2x128xf32> to vector<2x32xf32>
    %144 = arith.negf %143 : vector<2x32xf32>
    %145 = math.exp %144 : vector<2x32xf32>
    %cst_43 = arith.constant 1.000000e+00 : f32
    %146 = vector.broadcast %cst_43 : f32 to vector<2x32xf32>
    %147 = arith.addf %146, %145 : vector<2x32xf32>
    %148 = arith.divf %146, %147 : vector<2x32xf32>
    %149 = vector.extract_strided_slice %136 {offsets = [0, 64], sizes = [2, 32], strides = [1, 1]} : vector<2x128xf32> to vector<2x32xf32>
    %150 = math.tanh %149 : vector<2x32xf32>
    %151 = vector.extract_strided_slice %136 {offsets = [0, 96], sizes = [2, 32], strides = [1, 1]} : vector<2x128xf32> to vector<2x32xf32>
    %152 = arith.negf %151 : vector<2x32xf32>
    %153 = math.exp %152 : vector<2x32xf32>
    %cst_44 = arith.constant 1.000000e+00 : f32
    %154 = vector.broadcast %cst_44 : f32 to vector<2x32xf32>
    %155 = arith.addf %154, %153 : vector<2x32xf32>
    %156 = arith.divf %154, %155 : vector<2x32xf32>
    %157 = arith.mulf %148, %128 : vector<2x32xf32>
    %158 = arith.mulf %142, %150 : vector<2x32xf32>
    %159 = arith.addf %157, %158 : vector<2x32xf32>
    %160 = math.tanh %159 : vector<2x32xf32>
    %161 = arith.mulf %156, %160 : vector<2x32xf32>
    %c8_45 = arith.constant 8 : index
    %c0_46 = arith.constant 0 : index
    %162 = vector.load %arg11[%c8_45, %c0_46] : memref<16x32xf32, #tpu.memory_space<vmem>>, vector<2x32xf32>
    tpu.vector_store %arg11[%c8_45, %c0_46], %161 {strides = array<i32>} : memref<16x32xf32, #tpu.memory_space<vmem>>, vector<2x32xf32>,
    %c10 = arith.constant 10 : index
    %c0_47 = arith.constant 0 : index
    %163 = vector.load %arg9[%c10, %c0_47] : memref<16x128xf32, #tpu.memory_space<vmem>>, vector<2x128xf32>
    %164 = vector.broadcast %5 : vector<1x128xf32> to vector<2x128xf32>
    %165 = arith.addf %163, %164 : vector<2x128xf32>
    %cst_48 = arith.constant dense<0.000000e+00> : vector<2x128xf32>
    %166 = tpu.matmul %161, %4, %cst_48 {dimension_numbers = #tpu.dot_dimension_numbers<[1], [0], [0], [1], [0, 0, 1, 1], [], []>} : vector<2x32xf32>, vector<32x128xf32>, vector<2x128xf32> -> vector<2x128xf32>
    %167 = arith.addf %165, %166 : vector<2x128xf32>
    %168 = vector.extract_strided_slice %167 {offsets = [0, 0], sizes = [2, 32], strides = [1, 1]} : vector<2x128xf32> to vector<2x32xf32>
    %169 = arith.negf %168 : vector<2x32xf32>
    %170 = math.exp %169 : vector<2x32xf32>
    %cst_49 = arith.constant 1.000000e+00 : f32
    %171 = vector.broadcast %cst_49 : f32 to vector<2x32xf32>
    %172 = arith.addf %171, %170 : vector<2x32xf32>
    %173 = arith.divf %171, %172 : vector<2x32xf32>
    %174 = vector.extract_strided_slice %167 {offsets = [0, 32], sizes = [2, 32], strides = [1, 1]} : vector<2x128xf32> to vector<2x32xf32>
    %175 = arith.negf %174 : vector<2x32xf32>
    %176 = math.exp %175 : vector<2x32xf32>
    %cst_50 = arith.constant 1.000000e+00 : f32
    %177 = vector.broadcast %cst_50 : f32 to vector<2x32xf32>
    %178 = arith.addf %177, %176 : vector<2x32xf32>
    %179 = arith.divf %177, %178 : vector<2x32xf32>
    %180 = vector.extract_strided_slice %167 {offsets = [0, 64], sizes = [2, 32], strides = [1, 1]} : vector<2x128xf32> to vector<2x32xf32>
    %181 = math.tanh %180 : vector<2x32xf32>
    %182 = vector.extract_strided_slice %167 {offsets = [0, 96], sizes = [2, 32], strides = [1, 1]} : vector<2x128xf32> to vector<2x32xf32>
    %183 = arith.negf %182 : vector<2x32xf32>
    %184 = math.exp %183 : vector<2x32xf32>
    %cst_51 = arith.constant 1.000000e+00 : f32
    %185 = vector.broadcast %cst_51 : f32 to vector<2x32xf32>
    %186 = arith.addf %185, %184 : vector<2x32xf32>
    %187 = arith.divf %185, %186 : vector<2x32xf32>
    %188 = arith.mulf %179, %159 : vector<2x32xf32>
    %189 = arith.mulf %173, %181 : vector<2x32xf32>
    %190 = arith.addf %188, %189 : vector<2x32xf32>
    %191 = math.tanh %190 : vector<2x32xf32>
    %192 = arith.mulf %187, %191 : vector<2x32xf32>
    %c10_52 = arith.constant 10 : index
    %c0_53 = arith.constant 0 : index
    %193 = vector.load %arg11[%c10_52, %c0_53] : memref<16x32xf32, #tpu.memory_space<vmem>>, vector<2x32xf32>
    tpu.vector_store %arg11[%c10_52, %c0_53], %192 {strides = array<i32>} : memref<16x32xf32, #tpu.memory_space<vmem>>, vector<2x32xf32>,
    %c12 = arith.constant 12 : index
    %c0_54 = arith.constant 0 : index
    %194 = vector.load %arg9[%c12, %c0_54] : memref<16x128xf32, #tpu.memory_space<vmem>>, vector<2x128xf32>
    %195 = vector.broadcast %5 : vector<1x128xf32> to vector<2x128xf32>
    %196 = arith.addf %194, %195 : vector<2x128xf32>
    %cst_55 = arith.constant dense<0.000000e+00> : vector<2x128xf32>
    %197 = tpu.matmul %192, %4, %cst_55 {dimension_numbers = #tpu.dot_dimension_numbers<[1], [0], [0], [1], [0, 0, 1, 1], [], []>} : vector<2x32xf32>, vector<32x128xf32>, vector<2x128xf32> -> vector<2x128xf32>
    %198 = arith.addf %196, %197 : vector<2x128xf32>
    %199 = vector.extract_strided_slice %198 {offsets = [0, 0], sizes = [2, 32], strides = [1, 1]} : vector<2x128xf32> to vector<2x32xf32>
    %200 = arith.negf %199 : vector<2x32xf32>
    %201 = math.exp %200 : vector<2x32xf32>
    %cst_56 = arith.constant 1.000000e+00 : f32
    %202 = vector.broadcast %cst_56 : f32 to vector<2x32xf32>
    %203 = arith.addf %202, %201 : vector<2x32xf32>
    %204 = arith.divf %202, %203 : vector<2x32xf32>
    %205 = vector.extract_strided_slice %198 {offsets = [0, 32], sizes = [2, 32], strides = [1, 1]} : vector<2x128xf32> to vector<2x32xf32>
    %206 = arith.negf %205 : vector<2x32xf32>
    %207 = math.exp %206 : vector<2x32xf32>
    %cst_57 = arith.constant 1.000000e+00 : f32
    %208 = vector.broadcast %cst_57 : f32 to vector<2x32xf32>
    %209 = arith.addf %208, %207 : vector<2x32xf32>
    %210 = arith.divf %208, %209 : vector<2x32xf32>
    %211 = vector.extract_strided_slice %198 {offsets = [0, 64], sizes = [2, 32], strides = [1, 1]} : vector<2x128xf32> to vector<2x32xf32>
    %212 = math.tanh %211 : vector<2x32xf32>
    %213 = vector.extract_strided_slice %198 {offsets = [0, 96], sizes = [2, 32], strides = [1, 1]} : vector<2x128xf32> to vector<2x32xf32>
    %214 = arith.negf %213 : vector<2x32xf32>
    %215 = math.exp %214 : vector<2x32xf32>
    %cst_58 = arith.constant 1.000000e+00 : f32
    %216 = vector.broadcast %cst_58 : f32 to vector<2x32xf32>
    %217 = arith.addf %216, %215 : vector<2x32xf32>
    %218 = arith.divf %216, %217 : vector<2x32xf32>
    %219 = arith.mulf %210, %190 : vector<2x32xf32>
    %220 = arith.mulf %204, %212 : vector<2x32xf32>
    %221 = arith.addf %219, %220 : vector<2x32xf32>
    %222 = math.tanh %221 : vector<2x32xf32>
    %223 = arith.mulf %218, %222 : vector<2x32xf32>
    %c12_59 = arith.constant 12 : index
    %c0_60 = arith.constant 0 : index
    %224 = vector.load %arg11[%c12_59, %c0_60] : memref<16x32xf32, #tpu.memory_space<vmem>>, vector<2x32xf32>
    tpu.vector_store %arg11[%c12_59, %c0_60], %223 {strides = array<i32>} : memref<16x32xf32, #tpu.memory_space<vmem>>, vector<2x32xf32>,
    %c14 = arith.constant 14 : index
    %c0_61 = arith.constant 0 : index
    %225 = vector.load %arg9[%c14, %c0_61] : memref<16x128xf32, #tpu.memory_space<vmem>>, vector<2x128xf32>
    %226 = vector.broadcast %5 : vector<1x128xf32> to vector<2x128xf32>
    %227 = arith.addf %225, %226 : vector<2x128xf32>
    %cst_62 = arith.constant dense<0.000000e+00> : vector<2x128xf32>
    %228 = tpu.matmul %223, %4, %cst_62 {dimension_numbers = #tpu.dot_dimension_numbers<[1], [0], [0], [1], [0, 0, 1, 1], [], []>} : vector<2x32xf32>, vector<32x128xf32>, vector<2x128xf32> -> vector<2x128xf32>
    %229 = arith.addf %227, %228 : vector<2x128xf32>
    %230 = vector.extract_strided_slice %229 {offsets = [0, 0], sizes = [2, 32], strides = [1, 1]} : vector<2x128xf32> to vector<2x32xf32>
    %231 = arith.negf %230 : vector<2x32xf32>
    %232 = math.exp %231 : vector<2x32xf32>
    %cst_63 = arith.constant 1.000000e+00 : f32
    %233 = vector.broadcast %cst_63 : f32 to vector<2x32xf32>
    %234 = arith.addf %233, %232 : vector<2x32xf32>
    %235 = arith.divf %233, %234 : vector<2x32xf32>
    %236 = vector.extract_strided_slice %229 {offsets = [0, 32], sizes = [2, 32], strides = [1, 1]} : vector<2x128xf32> to vector<2x32xf32>
    %237 = arith.negf %236 : vector<2x32xf32>
    %238 = math.exp %237 : vector<2x32xf32>
    %cst_64 = arith.constant 1.000000e+00 : f32
    %239 = vector.broadcast %cst_64 : f32 to vector<2x32xf32>
    %240 = arith.addf %239, %238 : vector<2x32xf32>
    %241 = arith.divf %239, %240 : vector<2x32xf32>
    %242 = vector.extract_strided_slice %229 {offsets = [0, 64], sizes = [2, 32], strides = [1, 1]} : vector<2x128xf32> to vector<2x32xf32>
    %243 = math.tanh %242 : vector<2x32xf32>
    %244 = vector.extract_strided_slice %229 {offsets = [0, 96], sizes = [2, 32], strides = [1, 1]} : vector<2x128xf32> to vector<2x32xf32>
    %245 = arith.negf %244 : vector<2x32xf32>
    %246 = math.exp %245 : vector<2x32xf32>
    %cst_65 = arith.constant 1.000000e+00 : f32
    %247 = vector.broadcast %cst_65 : f32 to vector<2x32xf32>
    %248 = arith.addf %247, %246 : vector<2x32xf32>
    %249 = arith.divf %247, %248 : vector<2x32xf32>
    %250 = arith.mulf %241, %221 : vector<2x32xf32>
    %251 = arith.mulf %235, %243 : vector<2x32xf32>
    %252 = arith.addf %250, %251 : vector<2x32xf32>
    %253 = math.tanh %252 : vector<2x32xf32>
    %254 = arith.mulf %249, %253 : vector<2x32xf32>
    %c14_66 = arith.constant 14 : index
    %c0_67 = arith.constant 0 : index
    %255 = vector.load %arg11[%c14_66, %c0_67] : memref<16x32xf32, #tpu.memory_space<vmem>>, vector<2x32xf32>
    tpu.vector_store %arg11[%c14_66, %c0_67], %254 {strides = array<i32>} : memref<16x32xf32, #tpu.memory_space<vmem>>, vector<2x32xf32>,
    %c0_68 = arith.constant 0 : index
    %c0_69 = arith.constant 0 : index
    %256 = vector.load %arg11[%c0_68, %c0_69] : memref<16x32xf32, #tpu.memory_space<vmem>>, vector<16x32xf32>
    %c0_70 = arith.constant 0 : index
    %c0_71 = arith.constant 0 : index
    %257 = vector.load %arg5[%c0_70, %c0_71] : memref<32x128xf32, #tpu.memory_space<vmem>>, vector<32x128xf32>
    %cst_72 = arith.constant dense<0.000000e+00> : vector<16x128xf32>
    %258 = tpu.matmul %256, %257, %cst_72 {dimension_numbers = #tpu.dot_dimension_numbers<[1], [0], [0], [1], [0, 0, 1, 1], [], []>} : vector<16x32xf32>, vector<32x128xf32>, vector<16x128xf32> -> vector<16x128xf32>
    %c0_73 = arith.constant 0 : index
    %c0_74 = arith.constant 0 : index
    %259 = vector.load %arg10[%c0_73, %c0_74] : memref<16x128xf32, #tpu.memory_space<vmem>>, vector<16x128xf32>
    tpu.vector_store %arg10[%c0_73, %c0_74], %258 {strides = array<i32>} : memref<16x128xf32, #tpu.memory_space<vmem>>, vector<16x128xf32>,
    %c0_75 = arith.constant 0 : index
    %c0_76 = arith.constant 0 : index
    %260 = vector.load %arg6[%c0_75, %c0_76] : memref<32x128xf32, #tpu.memory_space<vmem>>, vector<32x128xf32>
    %c0_77 = arith.constant 0 : index
    %c0_78 = arith.constant 0 : index
    %261 = vector.load %arg7[%c0_77, %c0_78] : memref<1x128xf32, #tpu.memory_space<vmem>>, vector<1x128xf32>
    %cst_79 = arith.constant 0.000000e+00 : f32
    %262 = vector.broadcast %cst_79 : f32 to vector<2x32xf32>
    %cst_80 = arith.constant 0.000000e+00 : f32
    %263 = vector.broadcast %cst_80 : f32 to vector<2x32xf32>
    %c0_81 = arith.constant 0 : index
    %c0_82 = arith.constant 0 : index
    %264 = vector.load %arg10[%c0_81, %c0_82] : memref<16x128xf32, #tpu.memory_space<vmem>>, vector<2x128xf32>
    %265 = vector.broadcast %261 : vector<1x128xf32> to vector<2x128xf32>
    %266 = arith.addf %264, %265 : vector<2x128xf32>
    %cst_83 = arith.constant dense<0.000000e+00> : vector<2x128xf32>
    %267 = tpu.matmul %262, %260, %cst_83 {dimension_numbers = #tpu.dot_dimension_numbers<[1], [0], [0], [1], [0, 0, 1, 1], [], []>} : vector<2x32xf32>, vector<32x128xf32>, vector<2x128xf32> -> vector<2x128xf32>
    %268 = arith.addf %266, %267 : vector<2x128xf32>
    %269 = vector.extract_strided_slice %268 {offsets = [0, 0], sizes = [2, 32], strides = [1, 1]} : vector<2x128xf32> to vector<2x32xf32>
    %270 = arith.negf %269 : vector<2x32xf32>
    %271 = math.exp %270 : vector<2x32xf32>
    %cst_84 = arith.constant 1.000000e+00 : f32
    %272 = vector.broadcast %cst_84 : f32 to vector<2x32xf32>
    %273 = arith.addf %272, %271 : vector<2x32xf32>
    %274 = arith.divf %272, %273 : vector<2x32xf32>
    %275 = vector.extract_strided_slice %268 {offsets = [0, 32], sizes = [2, 32], strides = [1, 1]} : vector<2x128xf32> to vector<2x32xf32>
    %276 = arith.negf %275 : vector<2x32xf32>
    %277 = math.exp %276 : vector<2x32xf32>
    %cst_85 = arith.constant 1.000000e+00 : f32
    %278 = vector.broadcast %cst_85 : f32 to vector<2x32xf32>
    %279 = arith.addf %278, %277 : vector<2x32xf32>
    %280 = arith.divf %278, %279 : vector<2x32xf32>
    %281 = vector.extract_strided_slice %268 {offsets = [0, 64], sizes = [2, 32], strides = [1, 1]} : vector<2x128xf32> to vector<2x32xf32>
    %282 = math.tanh %281 : vector<2x32xf32>
    %283 = vector.extract_strided_slice %268 {offsets = [0, 96], sizes = [2, 32], strides = [1, 1]} : vector<2x128xf32> to vector<2x32xf32>
    %284 = arith.negf %283 : vector<2x32xf32>
    %285 = math.exp %284 : vector<2x32xf32>
    %cst_86 = arith.constant 1.000000e+00 : f32
    %286 = vector.broadcast %cst_86 : f32 to vector<2x32xf32>
    %287 = arith.addf %286, %285 : vector<2x32xf32>
    %288 = arith.divf %286, %287 : vector<2x32xf32>
    %289 = arith.mulf %280, %263 : vector<2x32xf32>
    %290 = arith.mulf %274, %282 : vector<2x32xf32>
    %291 = arith.addf %289, %290 : vector<2x32xf32>
    %292 = math.tanh %291 : vector<2x32xf32>
    %293 = arith.mulf %288, %292 : vector<2x32xf32>
    %c0_87 = arith.constant 0 : index
    %c0_88 = arith.constant 0 : index
    %294 = vector.load %arg8[%c0_87, %c0_88] : memref<16x32xf32, #tpu.memory_space<vmem>>, vector<2x32xf32>
    tpu.vector_store %arg8[%c0_87, %c0_88], %293 {strides = array<i32>} : memref<16x32xf32, #tpu.memory_space<vmem>>, vector<2x32xf32>,
    %c2_89 = arith.constant 2 : index
    %c0_90 = arith.constant 0 : index
    %295 = vector.load %arg10[%c2_89, %c0_90] : memref<16x128xf32, #tpu.memory_space<vmem>>, vector<2x128xf32>
    %296 = vector.broadcast %261 : vector<1x128xf32> to vector<2x128xf32>
    %297 = arith.addf %295, %296 : vector<2x128xf32>
    %cst_91 = arith.constant dense<0.000000e+00> : vector<2x128xf32>
    %298 = tpu.matmul %293, %260, %cst_91 {dimension_numbers = #tpu.dot_dimension_numbers<[1], [0], [0], [1], [0, 0, 1, 1], [], []>} : vector<2x32xf32>, vector<32x128xf32>, vector<2x128xf32> -> vector<2x128xf32>
    %299 = arith.addf %297, %298 : vector<2x128xf32>
    %300 = vector.extract_strided_slice %299 {offsets = [0, 0], sizes = [2, 32], strides = [1, 1]} : vector<2x128xf32> to vector<2x32xf32>
    %301 = arith.negf %300 : vector<2x32xf32>
    %302 = math.exp %301 : vector<2x32xf32>
    %cst_92 = arith.constant 1.000000e+00 : f32
    %303 = vector.broadcast %cst_92 : f32 to vector<2x32xf32>
    %304 = arith.addf %303, %302 : vector<2x32xf32>
    %305 = arith.divf %303, %304 : vector<2x32xf32>
    %306 = vector.extract_strided_slice %299 {offsets = [0, 32], sizes = [2, 32], strides = [1, 1]} : vector<2x128xf32> to vector<2x32xf32>
    %307 = arith.negf %306 : vector<2x32xf32>
    %308 = math.exp %307 : vector<2x32xf32>
    %cst_93 = arith.constant 1.000000e+00 : f32
    %309 = vector.broadcast %cst_93 : f32 to vector<2x32xf32>
    %310 = arith.addf %309, %308 : vector<2x32xf32>
    %311 = arith.divf %309, %310 : vector<2x32xf32>
    %312 = vector.extract_strided_slice %299 {offsets = [0, 64], sizes = [2, 32], strides = [1, 1]} : vector<2x128xf32> to vector<2x32xf32>
    %313 = math.tanh %312 : vector<2x32xf32>
    %314 = vector.extract_strided_slice %299 {offsets = [0, 96], sizes = [2, 32], strides = [1, 1]} : vector<2x128xf32> to vector<2x32xf32>
    %315 = arith.negf %314 : vector<2x32xf32>
    %316 = math.exp %315 : vector<2x32xf32>
    %cst_94 = arith.constant 1.000000e+00 : f32
    %317 = vector.broadcast %cst_94 : f32 to vector<2x32xf32>
    %318 = arith.addf %317, %316 : vector<2x32xf32>
    %319 = arith.divf %317, %318 : vector<2x32xf32>
    %320 = arith.mulf %311, %291 : vector<2x32xf32>
    %321 = arith.mulf %305, %313 : vector<2x32xf32>
    %322 = arith.addf %320, %321 : vector<2x32xf32>
    %323 = math.tanh %322 : vector<2x32xf32>
    %324 = arith.mulf %319, %323 : vector<2x32xf32>
    %c2_95 = arith.constant 2 : index
    %c0_96 = arith.constant 0 : index
    %325 = vector.load %arg8[%c2_95, %c0_96] : memref<16x32xf32, #tpu.memory_space<vmem>>, vector<2x32xf32>
    tpu.vector_store %arg8[%c2_95, %c0_96], %324 {strides = array<i32>} : memref<16x32xf32, #tpu.memory_space<vmem>>, vector<2x32xf32>,
    %c4_97 = arith.constant 4 : index
    %c0_98 = arith.constant 0 : index
    %326 = vector.load %arg10[%c4_97, %c0_98] : memref<16x128xf32, #tpu.memory_space<vmem>>, vector<2x128xf32>
    %327 = vector.broadcast %261 : vector<1x128xf32> to vector<2x128xf32>
    %328 = arith.addf %326, %327 : vector<2x128xf32>
    %cst_99 = arith.constant dense<0.000000e+00> : vector<2x128xf32>
    %329 = tpu.matmul %324, %260, %cst_99 {dimension_numbers = #tpu.dot_dimension_numbers<[1], [0], [0], [1], [0, 0, 1, 1], [], []>} : vector<2x32xf32>, vector<32x128xf32>, vector<2x128xf32> -> vector<2x128xf32>
    %330 = arith.addf %328, %329 : vector<2x128xf32>
    %331 = vector.extract_strided_slice %330 {offsets = [0, 0], sizes = [2, 32], strides = [1, 1]} : vector<2x128xf32> to vector<2x32xf32>
    %332 = arith.negf %331 : vector<2x32xf32>
    %333 = math.exp %332 : vector<2x32xf32>
    %cst_100 = arith.constant 1.000000e+00 : f32
    %334 = vector.broadcast %cst_100 : f32 to vector<2x32xf32>
    %335 = arith.addf %334, %333 : vector<2x32xf32>
    %336 = arith.divf %334, %335 : vector<2x32xf32>
    %337 = vector.extract_strided_slice %330 {offsets = [0, 32], sizes = [2, 32], strides = [1, 1]} : vector<2x128xf32> to vector<2x32xf32>
    %338 = arith.negf %337 : vector<2x32xf32>
    %339 = math.exp %338 : vector<2x32xf32>
    %cst_101 = arith.constant 1.000000e+00 : f32
    %340 = vector.broadcast %cst_101 : f32 to vector<2x32xf32>
    %341 = arith.addf %340, %339 : vector<2x32xf32>
    %342 = arith.divf %340, %341 : vector<2x32xf32>
    %343 = vector.extract_strided_slice %330 {offsets = [0, 64], sizes = [2, 32], strides = [1, 1]} : vector<2x128xf32> to vector<2x32xf32>
    %344 = math.tanh %343 : vector<2x32xf32>
    %345 = vector.extract_strided_slice %330 {offsets = [0, 96], sizes = [2, 32], strides = [1, 1]} : vector<2x128xf32> to vector<2x32xf32>
    %346 = arith.negf %345 : vector<2x32xf32>
    %347 = math.exp %346 : vector<2x32xf32>
    %cst_102 = arith.constant 1.000000e+00 : f32
    %348 = vector.broadcast %cst_102 : f32 to vector<2x32xf32>
    %349 = arith.addf %348, %347 : vector<2x32xf32>
    %350 = arith.divf %348, %349 : vector<2x32xf32>
    %351 = arith.mulf %342, %322 : vector<2x32xf32>
    %352 = arith.mulf %336, %344 : vector<2x32xf32>
    %353 = arith.addf %351, %352 : vector<2x32xf32>
    %354 = math.tanh %353 : vector<2x32xf32>
    %355 = arith.mulf %350, %354 : vector<2x32xf32>
    %c4_103 = arith.constant 4 : index
    %c0_104 = arith.constant 0 : index
    %356 = vector.load %arg8[%c4_103, %c0_104] : memref<16x32xf32, #tpu.memory_space<vmem>>, vector<2x32xf32>
    tpu.vector_store %arg8[%c4_103, %c0_104], %355 {strides = array<i32>} : memref<16x32xf32, #tpu.memory_space<vmem>>, vector<2x32xf32>,
    %c6_105 = arith.constant 6 : index
    %c0_106 = arith.constant 0 : index
    %357 = vector.load %arg10[%c6_105, %c0_106] : memref<16x128xf32, #tpu.memory_space<vmem>>, vector<2x128xf32>
    %358 = vector.broadcast %261 : vector<1x128xf32> to vector<2x128xf32>
    %359 = arith.addf %357, %358 : vector<2x128xf32>
    %cst_107 = arith.constant dense<0.000000e+00> : vector<2x128xf32>
    %360 = tpu.matmul %355, %260, %cst_107 {dimension_numbers = #tpu.dot_dimension_numbers<[1], [0], [0], [1], [0, 0, 1, 1], [], []>} : vector<2x32xf32>, vector<32x128xf32>, vector<2x128xf32> -> vector<2x128xf32>
    %361 = arith.addf %359, %360 : vector<2x128xf32>
    %362 = vector.extract_strided_slice %361 {offsets = [0, 0], sizes = [2, 32], strides = [1, 1]} : vector<2x128xf32> to vector<2x32xf32>
    %363 = arith.negf %362 : vector<2x32xf32>
    %364 = math.exp %363 : vector<2x32xf32>
    %cst_108 = arith.constant 1.000000e+00 : f32
    %365 = vector.broadcast %cst_108 : f32 to vector<2x32xf32>
    %366 = arith.addf %365, %364 : vector<2x32xf32>
    %367 = arith.divf %365, %366 : vector<2x32xf32>
    %368 = vector.extract_strided_slice %361 {offsets = [0, 32], sizes = [2, 32], strides = [1, 1]} : vector<2x128xf32> to vector<2x32xf32>
    %369 = arith.negf %368 : vector<2x32xf32>
    %370 = math.exp %369 : vector<2x32xf32>
    %cst_109 = arith.constant 1.000000e+00 : f32
    %371 = vector.broadcast %cst_109 : f32 to vector<2x32xf32>
    %372 = arith.addf %371, %370 : vector<2x32xf32>
    %373 = arith.divf %371, %372 : vector<2x32xf32>
    %374 = vector.extract_strided_slice %361 {offsets = [0, 64], sizes = [2, 32], strides = [1, 1]} : vector<2x128xf32> to vector<2x32xf32>
    %375 = math.tanh %374 : vector<2x32xf32>
    %376 = vector.extract_strided_slice %361 {offsets = [0, 96], sizes = [2, 32], strides = [1, 1]} : vector<2x128xf32> to vector<2x32xf32>
    %377 = arith.negf %376 : vector<2x32xf32>
    %378 = math.exp %377 : vector<2x32xf32>
    %cst_110 = arith.constant 1.000000e+00 : f32
    %379 = vector.broadcast %cst_110 : f32 to vector<2x32xf32>
    %380 = arith.addf %379, %378 : vector<2x32xf32>
    %381 = arith.divf %379, %380 : vector<2x32xf32>
    %382 = arith.mulf %373, %353 : vector<2x32xf32>
    %383 = arith.mulf %367, %375 : vector<2x32xf32>
    %384 = arith.addf %382, %383 : vector<2x32xf32>
    %385 = math.tanh %384 : vector<2x32xf32>
    %386 = arith.mulf %381, %385 : vector<2x32xf32>
    %c6_111 = arith.constant 6 : index
    %c0_112 = arith.constant 0 : index
    %387 = vector.load %arg8[%c6_111, %c0_112] : memref<16x32xf32, #tpu.memory_space<vmem>>, vector<2x32xf32>
    tpu.vector_store %arg8[%c6_111, %c0_112], %386 {strides = array<i32>} : memref<16x32xf32, #tpu.memory_space<vmem>>, vector<2x32xf32>,
    %c8_113 = arith.constant 8 : index
    %c0_114 = arith.constant 0 : index
    %388 = vector.load %arg10[%c8_113, %c0_114] : memref<16x128xf32, #tpu.memory_space<vmem>>, vector<2x128xf32>
    %389 = vector.broadcast %261 : vector<1x128xf32> to vector<2x128xf32>
    %390 = arith.addf %388, %389 : vector<2x128xf32>
    %cst_115 = arith.constant dense<0.000000e+00> : vector<2x128xf32>
    %391 = tpu.matmul %386, %260, %cst_115 {dimension_numbers = #tpu.dot_dimension_numbers<[1], [0], [0], [1], [0, 0, 1, 1], [], []>} : vector<2x32xf32>, vector<32x128xf32>, vector<2x128xf32> -> vector<2x128xf32>
    %392 = arith.addf %390, %391 : vector<2x128xf32>
    %393 = vector.extract_strided_slice %392 {offsets = [0, 0], sizes = [2, 32], strides = [1, 1]} : vector<2x128xf32> to vector<2x32xf32>
    %394 = arith.negf %393 : vector<2x32xf32>
    %395 = math.exp %394 : vector<2x32xf32>
    %cst_116 = arith.constant 1.000000e+00 : f32
    %396 = vector.broadcast %cst_116 : f32 to vector<2x32xf32>
    %397 = arith.addf %396, %395 : vector<2x32xf32>
    %398 = arith.divf %396, %397 : vector<2x32xf32>
    %399 = vector.extract_strided_slice %392 {offsets = [0, 32], sizes = [2, 32], strides = [1, 1]} : vector<2x128xf32> to vector<2x32xf32>
    %400 = arith.negf %399 : vector<2x32xf32>
    %401 = math.exp %400 : vector<2x32xf32>
    %cst_117 = arith.constant 1.000000e+00 : f32
    %402 = vector.broadcast %cst_117 : f32 to vector<2x32xf32>
    %403 = arith.addf %402, %401 : vector<2x32xf32>
    %404 = arith.divf %402, %403 : vector<2x32xf32>
    %405 = vector.extract_strided_slice %392 {offsets = [0, 64], sizes = [2, 32], strides = [1, 1]} : vector<2x128xf32> to vector<2x32xf32>
    %406 = math.tanh %405 : vector<2x32xf32>
    %407 = vector.extract_strided_slice %392 {offsets = [0, 96], sizes = [2, 32], strides = [1, 1]} : vector<2x128xf32> to vector<2x32xf32>
    %408 = arith.negf %407 : vector<2x32xf32>
    %409 = math.exp %408 : vector<2x32xf32>
    %cst_118 = arith.constant 1.000000e+00 : f32
    %410 = vector.broadcast %cst_118 : f32 to vector<2x32xf32>
    %411 = arith.addf %410, %409 : vector<2x32xf32>
    %412 = arith.divf %410, %411 : vector<2x32xf32>
    %413 = arith.mulf %404, %384 : vector<2x32xf32>
    %414 = arith.mulf %398, %406 : vector<2x32xf32>
    %415 = arith.addf %413, %414 : vector<2x32xf32>
    %416 = math.tanh %415 : vector<2x32xf32>
    %417 = arith.mulf %412, %416 : vector<2x32xf32>
    %c8_119 = arith.constant 8 : index
    %c0_120 = arith.constant 0 : index
    %418 = vector.load %arg8[%c8_119, %c0_120] : memref<16x32xf32, #tpu.memory_space<vmem>>, vector<2x32xf32>
    tpu.vector_store %arg8[%c8_119, %c0_120], %417 {strides = array<i32>} : memref<16x32xf32, #tpu.memory_space<vmem>>, vector<2x32xf32>,
    %c10_121 = arith.constant 10 : index
    %c0_122 = arith.constant 0 : index
    %419 = vector.load %arg10[%c10_121, %c0_122] : memref<16x128xf32, #tpu.memory_space<vmem>>, vector<2x128xf32>
    %420 = vector.broadcast %261 : vector<1x128xf32> to vector<2x128xf32>
    %421 = arith.addf %419, %420 : vector<2x128xf32>
    %cst_123 = arith.constant dense<0.000000e+00> : vector<2x128xf32>
    %422 = tpu.matmul %417, %260, %cst_123 {dimension_numbers = #tpu.dot_dimension_numbers<[1], [0], [0], [1], [0, 0, 1, 1], [], []>} : vector<2x32xf32>, vector<32x128xf32>, vector<2x128xf32> -> vector<2x128xf32>
    %423 = arith.addf %421, %422 : vector<2x128xf32>
    %424 = vector.extract_strided_slice %423 {offsets = [0, 0], sizes = [2, 32], strides = [1, 1]} : vector<2x128xf32> to vector<2x32xf32>
    %425 = arith.negf %424 : vector<2x32xf32>
    %426 = math.exp %425 : vector<2x32xf32>
    %cst_124 = arith.constant 1.000000e+00 : f32
    %427 = vector.broadcast %cst_124 : f32 to vector<2x32xf32>
    %428 = arith.addf %427, %426 : vector<2x32xf32>
    %429 = arith.divf %427, %428 : vector<2x32xf32>
    %430 = vector.extract_strided_slice %423 {offsets = [0, 32], sizes = [2, 32], strides = [1, 1]} : vector<2x128xf32> to vector<2x32xf32>
    %431 = arith.negf %430 : vector<2x32xf32>
    %432 = math.exp %431 : vector<2x32xf32>
    %cst_125 = arith.constant 1.000000e+00 : f32
    %433 = vector.broadcast %cst_125 : f32 to vector<2x32xf32>
    %434 = arith.addf %433, %432 : vector<2x32xf32>
    %435 = arith.divf %433, %434 : vector<2x32xf32>
    %436 = vector.extract_strided_slice %423 {offsets = [0, 64], sizes = [2, 32], strides = [1, 1]} : vector<2x128xf32> to vector<2x32xf32>
    %437 = math.tanh %436 : vector<2x32xf32>
    %438 = vector.extract_strided_slice %423 {offsets = [0, 96], sizes = [2, 32], strides = [1, 1]} : vector<2x128xf32> to vector<2x32xf32>
    %439 = arith.negf %438 : vector<2x32xf32>
    %440 = math.exp %439 : vector<2x32xf32>
    %cst_126 = arith.constant 1.000000e+00 : f32
    %441 = vector.broadcast %cst_126 : f32 to vector<2x32xf32>
    %442 = arith.addf %441, %440 : vector<2x32xf32>
    %443 = arith.divf %441, %442 : vector<2x32xf32>
    %444 = arith.mulf %435, %415 : vector<2x32xf32>
    %445 = arith.mulf %429, %437 : vector<2x32xf32>
    %446 = arith.addf %444, %445 : vector<2x32xf32>
    %447 = math.tanh %446 : vector<2x32xf32>
    %448 = arith.mulf %443, %447 : vector<2x32xf32>
    %c10_127 = arith.constant 10 : index
    %c0_128 = arith.constant 0 : index
    %449 = vector.load %arg8[%c10_127, %c0_128] : memref<16x32xf32, #tpu.memory_space<vmem>>, vector<2x32xf32>
    tpu.vector_store %arg8[%c10_127, %c0_128], %448 {strides = array<i32>} : memref<16x32xf32, #tpu.memory_space<vmem>>, vector<2x32xf32>,
    %c12_129 = arith.constant 12 : index
    %c0_130 = arith.constant 0 : index
    %450 = vector.load %arg10[%c12_129, %c0_130] : memref<16x128xf32, #tpu.memory_space<vmem>>, vector<2x128xf32>
    %451 = vector.broadcast %261 : vector<1x128xf32> to vector<2x128xf32>
    %452 = arith.addf %450, %451 : vector<2x128xf32>
    %cst_131 = arith.constant dense<0.000000e+00> : vector<2x128xf32>
    %453 = tpu.matmul %448, %260, %cst_131 {dimension_numbers = #tpu.dot_dimension_numbers<[1], [0], [0], [1], [0, 0, 1, 1], [], []>} : vector<2x32xf32>, vector<32x128xf32>, vector<2x128xf32> -> vector<2x128xf32>
    %454 = arith.addf %452, %453 : vector<2x128xf32>
    %455 = vector.extract_strided_slice %454 {offsets = [0, 0], sizes = [2, 32], strides = [1, 1]} : vector<2x128xf32> to vector<2x32xf32>
    %456 = arith.negf %455 : vector<2x32xf32>
    %457 = math.exp %456 : vector<2x32xf32>
    %cst_132 = arith.constant 1.000000e+00 : f32
    %458 = vector.broadcast %cst_132 : f32 to vector<2x32xf32>
    %459 = arith.addf %458, %457 : vector<2x32xf32>
    %460 = arith.divf %458, %459 : vector<2x32xf32>
    %461 = vector.extract_strided_slice %454 {offsets = [0, 32], sizes = [2, 32], strides = [1, 1]} : vector<2x128xf32> to vector<2x32xf32>
    %462 = arith.negf %461 : vector<2x32xf32>
    %463 = math.exp %462 : vector<2x32xf32>
    %cst_133 = arith.constant 1.000000e+00 : f32
    %464 = vector.broadcast %cst_133 : f32 to vector<2x32xf32>
    %465 = arith.addf %464, %463 : vector<2x32xf32>
    %466 = arith.divf %464, %465 : vector<2x32xf32>
    %467 = vector.extract_strided_slice %454 {offsets = [0, 64], sizes = [2, 32], strides = [1, 1]} : vector<2x128xf32> to vector<2x32xf32>
    %468 = math.tanh %467 : vector<2x32xf32>
    %469 = vector.extract_strided_slice %454 {offsets = [0, 96], sizes = [2, 32], strides = [1, 1]} : vector<2x128xf32> to vector<2x32xf32>
    %470 = arith.negf %469 : vector<2x32xf32>
    %471 = math.exp %470 : vector<2x32xf32>
    %cst_134 = arith.constant 1.000000e+00 : f32
    %472 = vector.broadcast %cst_134 : f32 to vector<2x32xf32>
    %473 = arith.addf %472, %471 : vector<2x32xf32>
    %474 = arith.divf %472, %473 : vector<2x32xf32>
    %475 = arith.mulf %466, %446 : vector<2x32xf32>
    %476 = arith.mulf %460, %468 : vector<2x32xf32>
    %477 = arith.addf %475, %476 : vector<2x32xf32>
    %478 = math.tanh %477 : vector<2x32xf32>
    %479 = arith.mulf %474, %478 : vector<2x32xf32>
    %c12_135 = arith.constant 12 : index
    %c0_136 = arith.constant 0 : index
    %480 = vector.load %arg8[%c12_135, %c0_136] : memref<16x32xf32, #tpu.memory_space<vmem>>, vector<2x32xf32>
    tpu.vector_store %arg8[%c12_135, %c0_136], %479 {strides = array<i32>} : memref<16x32xf32, #tpu.memory_space<vmem>>, vector<2x32xf32>,
    %c14_137 = arith.constant 14 : index
    %c0_138 = arith.constant 0 : index
    %481 = vector.load %arg10[%c14_137, %c0_138] : memref<16x128xf32, #tpu.memory_space<vmem>>, vector<2x128xf32>
    %482 = vector.broadcast %261 : vector<1x128xf32> to vector<2x128xf32>
    %483 = arith.addf %481, %482 : vector<2x128xf32>
    %cst_139 = arith.constant dense<0.000000e+00> : vector<2x128xf32>
    %484 = tpu.matmul %479, %260, %cst_139 {dimension_numbers = #tpu.dot_dimension_numbers<[1], [0], [0], [1], [0, 0, 1, 1], [], []>} : vector<2x32xf32>, vector<32x128xf32>, vector<2x128xf32> -> vector<2x128xf32>
    %485 = arith.addf %483, %484 : vector<2x128xf32>
    %486 = vector.extract_strided_slice %485 {offsets = [0, 0], sizes = [2, 32], strides = [1, 1]} : vector<2x128xf32> to vector<2x32xf32>
    %487 = arith.negf %486 : vector<2x32xf32>
    %488 = math.exp %487 : vector<2x32xf32>
    %cst_140 = arith.constant 1.000000e+00 : f32
    %489 = vector.broadcast %cst_140 : f32 to vector<2x32xf32>
    %490 = arith.addf %489, %488 : vector<2x32xf32>
    %491 = arith.divf %489, %490 : vector<2x32xf32>
    %492 = vector.extract_strided_slice %485 {offsets = [0, 32], sizes = [2, 32], strides = [1, 1]} : vector<2x128xf32> to vector<2x32xf32>
    %493 = arith.negf %492 : vector<2x32xf32>
    %494 = math.exp %493 : vector<2x32xf32>
    %cst_141 = arith.constant 1.000000e+00 : f32
    %495 = vector.broadcast %cst_141 : f32 to vector<2x32xf32>
    %496 = arith.addf %495, %494 : vector<2x32xf32>
    %497 = arith.divf %495, %496 : vector<2x32xf32>
    %498 = vector.extract_strided_slice %485 {offsets = [0, 64], sizes = [2, 32], strides = [1, 1]} : vector<2x128xf32> to vector<2x32xf32>
    %499 = math.tanh %498 : vector<2x32xf32>
    %500 = vector.extract_strided_slice %485 {offsets = [0, 96], sizes = [2, 32], strides = [1, 1]} : vector<2x128xf32> to vector<2x32xf32>
    %501 = arith.negf %500 : vector<2x32xf32>
    %502 = math.exp %501 : vector<2x32xf32>
    %cst_142 = arith.constant 1.000000e+00 : f32
    %503 = vector.broadcast %cst_142 : f32 to vector<2x32xf32>
    %504 = arith.addf %503, %502 : vector<2x32xf32>
    %505 = arith.divf %503, %504 : vector<2x32xf32>
    %506 = arith.mulf %497, %477 : vector<2x32xf32>
    %507 = arith.mulf %491, %499 : vector<2x32xf32>
    %508 = arith.addf %506, %507 : vector<2x32xf32>
    %509 = math.tanh %508 : vector<2x32xf32>
    %510 = arith.mulf %505, %509 : vector<2x32xf32>
    %c14_143 = arith.constant 14 : index
    %c0_144 = arith.constant 0 : index
    %511 = vector.load %arg8[%c14_143, %c0_144] : memref<16x32xf32, #tpu.memory_space<vmem>>, vector<2x32xf32>
    tpu.vector_store %arg8[%c14_143, %c0_144], %510 {strides = array<i32>} : memref<16x32xf32, #tpu.memory_space<vmem>>, vector<2x32xf32>,
    return
  }
  func.func @transform_0(%arg0: i32) -> (i32, i32) {
    %c0_i32 = arith.constant 0 : i32
    %c0_i32_0 = arith.constant 0 : i32
    %c0_i32_1 = arith.constant 0 : i32
    return %c0_i32, %c0_i32_0 : i32, i32
  }
  func.func @transform_1(%arg0: i32) -> (i32, i32) {
    %c0_i32 = arith.constant 0 : i32
    %c0_i32_0 = arith.constant 0 : i32
    %c0_i32_1 = arith.constant 0 : i32
    return %c0_i32, %c0_i32_0 : i32, i32
  }
  func.func @transform_2(%arg0: i32) -> (i32, i32) {
    %c0_i32 = arith.constant 0 : i32
    %c0_i32_0 = arith.constant 0 : i32
    %c0_i32_1 = arith.constant 0 : i32
    return %c0_i32, %c0_i32_0 : i32, i32
  }
  func.func @transform_3(%arg0: i32) -> (i32, i32) {
    %c0_i32 = arith.constant 0 : i32
    %c0_i32_0 = arith.constant 0 : i32
    %c0_i32_1 = arith.constant 0 : i32
    return %c0_i32, %c0_i32_0 : i32, i32
  }
  func.func @transform_4(%arg0: i32) -> (i32, i32) {
    %c0_i32 = arith.constant 0 : i32
    %c0_i32_0 = arith.constant 0 : i32
    %c0_i32_1 = arith.constant 0 : i32
    return %c0_i32, %c0_i32_0 : i32, i32
  }
  func.func @transform_5(%arg0: i32) -> (i32, i32) {
    %c0_i32 = arith.constant 0 : i32
    %c0_i32_0 = arith.constant 0 : i32
    %c0_i32_1 = arith.constant 0 : i32
    return %c0_i32, %c0_i32_0 : i32, i32
  }
  func.func @transform_6(%arg0: i32) -> (i32, i32) {
    %c0_i32 = arith.constant 0 : i32
    %c0_i32_0 = arith.constant 0 : i32
    %c0_i32_1 = arith.constant 0 : i32
    return %c0_i32, %c0_i32_0 : i32, i32
  }
  func.func @transform_7(%arg0: i32) -> (i32, i32) {
    %c0_i32 = arith.constant 0 : i32
    %c0_i32_0 = arith.constant 0 : i32
    %c0_i32_1 = arith.constant 0 : i32
    return %c0_i32, %c0_i32_0 : i32, i32
  }
}

</mosaic_0001>

<llo_original>
// kernel: tpu_custom_call.1
$region0: #{tpu_custom_call.1}
  #allocation0 [shape = 'u32[]', space=smem, size = 0x4, offset = 0x4, fixed_abs, tag = 'smem constant byte address 0x4 - core index']
  #allocation1 [shape = 'u32[144,128]{1,0:T(1,128)}', space=vmem, size = 0x12000, scoped, tag = 'internal scratch']
  #allocation2 [shape = 'f32[16,128]{1,0:T(8,128)}', space=vmem, size = 0x2000, scoped, tag = 'scratch operand']
  #allocation3 [shape = 'f32[16,128]{1,0:T(8,128)}', space=vmem, size = 0x2000, scoped, tag = 'scratch operand']
  #allocation4 [shape = 'f32[16,32]{1,0:T(8,128)}', space=vmem, size = 0x2000, scoped, tag = 'scratch operand']
  %s0 = inlined_call_operand.hbm [shape: f32[16,32], index: 0, kind: input, shape index: {}]
  %s1 = inlined_call_operand.hbm [shape: f32[32,128], index: 1, kind: input, shape index: {}]
  %s2 = inlined_call_operand.hbm [shape: f32[32,128], index: 2, kind: input, shape index: {}]
  %s3 = inlined_call_operand.vmem [shape: f32[1,128], index: 3, kind: input, shape index: {}]
  %s4 = inlined_call_operand.hbm [shape: f32[32,128], index: 4, kind: input, shape index: {}]
  %s5 = inlined_call_operand.hbm [shape: f32[32,128], index: 5, kind: input, shape index: {}]
  %s6 = inlined_call_operand.vmem [shape: f32[1,128], index: 6, kind: input, shape index: {}]
  %s7 = inlined_call_operand.hbm [shape: f32[16,32], index: 7, kind: output, shape index: {}]
  %s8 = sld [smem:[#allocation0]]
  $region58: #{tpu_custom_call.1} parent=0
    _
  %s10 = ssub.s32 1, %s8
  %s11 = scalar_select 0, %s10, %s8
  $region1: #{tpu_custom_call.1} parent=0
    #allocation5 [shape = 'u8[8192]{0}', space=vmem, size = 0x2000, scoped, tag = 'input window, operand 0, single buffered']
    #allocation6 [shape = 's32[1]{0}', space=sflag, size = 0x4, scoped, tag = 'scoped memory for tpu_custom_call.1']
    #allocation7 [shape = 's32[1]{0}', space=sflag, size = 0x4, scoped, tag = 'scoped memory for tpu_custom_call.1']
    #allocation8 [shape = 'u8[16384]{0}', space=vmem, size = 0x4000, scoped, tag = 'input window, operand 1, single buffered']
    #allocation9 [shape = 's32[1]{0}', space=sflag, size = 0x4, scoped, tag = 'scoped memory for tpu_custom_call.1']
    #allocation10 [shape = 'u8[16384]{0}', space=vmem, size = 0x4000, scoped, tag = 'input window, operand 2, single buffered']
    #allocation11 [shape = 'u8[16384]{0}', space=vmem, size = 0x4000, scoped, tag = 'input window, operand 4, single buffered']
    #allocation12 [shape = 's32[1]{0}', space=sflag, size = 0x4, scoped, tag = 'scoped memory for tpu_custom_call.1']
    #allocation13 [shape = 'u8[16384]{0}', space=vmem, size = 0x4000, scoped, tag = 'input window, operand 5, single buffered']
    #allocation14 [shape = 'u8[8192]{0}', space=vmem, size = 0x2000, scoped, tag = 'output window, operand 0, single buffered']
    %12 = vsyncpa [#allocation6], 0
    %13 = vsyncpa [#allocation9], 0
    %14 = vsyncpa [#allocation12], 0
    %15 = vsyncpa [#allocation7], 0
    // Predicated region
    $region2: #{tpu_custom_call.1} parent=1 // pred_check
      _
    $region3: #{tpu_custom_call.1} parent=1 // pred_check_branch
      %17 = sbr.rel (0) target = $region5
    $region4: #{tpu_custom_call.1} parent=1 // pred_region
      %s19 = ssub.s32 256, 256
      %20 = vsyncadd [#allocation6], %s19
      %s21 = sshll.u32 [#allocation5], 4
      %s22 = int_to_ptr.vmem [resolvable:$true] %s21
      %27 = dma.hbm_to_vmem [thread:$0]  %s0, 256, %s22, [#allocation6], 128, 128, 8
    $region5: #{tpu_custom_call.1} parent=1 // pred_fallthru
      _
    // Predicated region
    $region6: #{tpu_custom_call.1} parent=1 // pred_check
      _
    $region7: #{tpu_custom_call.1} parent=1 // pred_check_branch
      %29 = sbr.rel (0) target = $region9
    $region8: #{tpu_custom_call.1} parent=1 // pred_region
      %s31 = ssub.s32 512, 512
      %32 = vsyncadd [#allocation9], %s31
      %s33 = sshll.u32 [#allocation8], 4
      %s34 = int_to_ptr.vmem [resolvable:$true] %s33
      %39 = dma.hbm_to_vmem [thread:$0]  %s1, 512, %s34, [#allocation9], 128, 128, 8
    $region9: #{tpu_custom_call.1} parent=1 // pred_fallthru
      _
    // Predicated region
    $region10: #{tpu_custom_call.1} parent=1 // pred_check
      _
    $region11: #{tpu_custom_call.1} parent=1 // pred_check_branch
      %41 = sbr.rel (0) target = $region13
    $region12: #{tpu_custom_call.1} parent=1 // pred_region
      %s43 = ssub.s32 512, 512
      %44 = vsyncadd [#allocation9], %s43
      %s45 = sshll.u32 [#allocation10], 4
      %s46 = int_to_ptr.vmem [resolvable:$true] %s45
      %51 = dma.hbm_to_vmem [thread:$0]  %s2, 512, %s46, [#allocation9], 128, 128, 8
    $region13: #{tpu_custom_call.1} parent=1 // pred_fallthru
      _
    // Predicated region
    $region14: #{tpu_custom_call.1} parent=1 // pred_check
      _
    $region15: #{tpu_custom_call.1} parent=1 // pred_check_branch
      %53 = sbr.rel (0) target = $region17
    $region16: #{tpu_custom_call.1} parent=1 // pred_region
      _
    $region17: #{tpu_custom_call.1} parent=1 // pred_fallthru
      _
    // Predicated region
    $region18: #{tpu_custom_call.1} parent=1 // pred_check
      _
    $region19: #{tpu_custom_call.1} parent=1 // pred_check_branch
      %55 = sbr.rel (0) target = $region21
    $region20: #{tpu_custom_call.1} parent=1 // pred_region
      %s57 = ssub.s32 512, 512
      %58 = vsyncadd [#allocation12], %s57
      %s59 = sshll.u32 [#allocation11], 4
      %s60 = int_to_ptr.vmem [resolvable:$true] %s59
      %65 = dma.hbm_to_vmem [thread:$0]  %s4, 512, %s60, [#allocation12], 128, 128, 8
    $region21: #{tpu_custom_call.1} parent=1 // pred_fallthru
      _
    // Predicated region
    $region22: #{tpu_custom_call.1} parent=1 // pred_check
      _
    $region23: #{tpu_custom_call.1} parent=1 // pred_check_branch
      %67 = sbr.rel (0) target = $region25
    $region24: #{tpu_custom_call.1} parent=1 // pred_region
      %s69 = ssub.s32 512, 512
      %70 = vsyncadd [#allocation12], %s69
      %s71 = sshll.u32 [#allocation13], 4
      %s72 = int_to_ptr.vmem [resolvable:$true] %s71
      %77 = dma.hbm_to_vmem [thread:$0]  %s5, 512, %s72, [#allocation12], 128, 128, 8
    $region25: #{tpu_custom_call.1} parent=1 // pred_fallthru
      _
    // Predicated region
    $region26: #{tpu_custom_call.1} parent=1 // pred_check
      _
    $region27: #{tpu_custom_call.1} parent=1 // pred_check_branch
      %79 = sbr.rel (0) target = $region29
    $region28: #{tpu_custom_call.1} parent=1 // pred_region
      _
    $region29: #{tpu_custom_call.1} parent=1 // pred_fallthru
      _
    // Predicated region
    $region30: #{tpu_custom_call.1} parent=1 // pred_check
      _
    $region31: #{tpu_custom_call.1} parent=1 // pred_check_branch
      %81 = sbr.rel (0) target = $region33
    $region32: #{tpu_custom_call.1} parent=1 // pred_region
      %82 = dma.done [#allocation6], 256
    $region33: #{tpu_custom_call.1} parent=1 // pred_fallthru
      _
    // Predicated region
    $region34: #{tpu_custom_call.1} parent=1 // pred_check
      _
    $region35: #{tpu_custom_call.1} parent=1 // pred_check_branch
      %84 = sbr.rel (0) target = $region37
    $region36: #{tpu_custom_call.1} parent=1 // pred_region
      %85 = dma.done [#allocation9], 512
    $region37: #{tpu_custom_call.1} parent=1 // pred_fallthru
      _
    // Predicated region
    $region38: #{tpu_custom_call.1} parent=1 // pred_check
      _
    $region39: #{tpu_custom_call.1} parent=1 // pred_check_branch
      %87 = sbr.rel (0) target = $region41
    $region40: #{tpu_custom_call.1} parent=1 // pred_region
      %88 = dma.done [#allocation9], 512
    $region41: #{tpu_custom_call.1} parent=1 // pred_fallthru
      _
    // Predicated region
    $region42: #{tpu_custom_call.1} parent=1 // pred_check
      _
    $region43: #{tpu_custom_call.1} parent=1 // pred_check_branch
      %90 = sbr.rel (0) target = $region45
    $region44: #{tpu_custom_call.1} parent=1 // pred_region
      %91 = dma.done [#allocation12], 512
    $region45: #{tpu_custom_call.1} parent=1 // pred_fallthru
      _
    // Predicated region
    $region46: #{tpu_custom_call.1} parent=1 // pred_check
      _
    $region47: #{tpu_custom_call.1} parent=1 // pred_check_branch
      %93 = sbr.rel (0) target = $region49
    $region48: #{tpu_custom_call.1} parent=1 // pred_region
      %94 = dma.done [#allocation12], 512
    $region49: #{tpu_custom_call.1} parent=1 // pred_fallthru
      _
    %v95 = vld [vmem:[#allocation5] sm:$0xff]
    %v96 = vld [vmem:[#allocation5 + $0x8] sm:$0xff]
    %v97 = vld [vmem:[#allocation8] sm:$0xff]
    %v98 = vld [vmem:[#allocation8 + $0x8] sm:$0xff]
    %v99 = vld [vmem:[#allocation8 + $0x10] sm:$0xff]
    %v100 = vld [vmem:[#allocation8 + $0x18] sm:$0xff]
    %vm101 = vcmask 261120
    %v103 = vsel %vm101, %v95, 0
    %v106 = vsel %vm101, %v96, 0
    %108 = vmatprep.subr.mxu0 0.0
    %109 = vmatpush1.msra.mxu0 0.0
    %110 = vmatprep.subr.mxu0 0.0
    %111 = vmatpush1.msra.mxu0 0.0
    %112 = vmatprep.subr.mxu0 0.0
    %113 = vmatpush1.msra.mxu0 0.0
    %114 = vmatprep.subr.mxu0 0.0
    %115 = vmatpush1.msra.mxu0 0.0
    %116 = vmatprep.subr.mxu0 0.0
    %117 = vmatpush1.msra.mxu0 0.0
    %118 = vmatprep.subr.mxu0 0.0
    %119 = vmatpush1.msra.mxu0 0.0
    %120 = vmatprep.subr.mxu0 0.0
    %121 = vmatpush1.msra.mxu0 0.0
    %122 = vmatprep.subr.mxu0 0.0
    %123 = vmatpush1.msra.mxu0 0.0
    %124 = vmatprep.subr.mxu0 0.0
    %125 = vmatpush1.msra.mxu0 0.0
    %126 = vmatprep.subr.mxu0 0.0
    %127 = vmatpush1.msra.mxu0 0.0
    %128 = vmatprep.subr.mxu0 0.0
    %129 = vmatpush1.msra.mxu0 0.0
    %130 = vmatprep.subr.mxu0 0.0
    %131 = vmatpush1.msra.mxu0 0.0
    %132 = vmatprep.subr.mxu0 0.0
    %133 = vmatpush1.msra.mxu0 %v100
    %134 = vmatprep.subr.mxu0 0.0
    %135 = vmatpush1.msra.mxu0 %v99
    %136 = vmatprep.subr.mxu0 0.0
    %137 = vmatpush1.msra.mxu0 %v98
    %138 = vmatprep.subr.mxu0 0.0
    %139 = vmatpush1.msra.mxu0 %v97
    %140 = vmatprep.subr.mxu0 0.0
    %141 = vmatpush2.msra.mxu0 0.0
    %142 = vmatprep.subr.mxu0 0.0
    %143 = vmatpush2.msra.mxu0 0.0
    %144 = vmatprep.subr.mxu0 0.0
    %145 = vmatpush2.msra.mxu0 0.0
    %146 = vmatprep.subr.mxu0 0.0
    %147 = vmatpush2.msra.mxu0 0.0
    %148 = vmatprep.subr.mxu0 0.0
    %149 = vmatpush2.msra.mxu0 0.0
    %150 = vmatprep.subr.mxu0 0.0
    %151 = vmatpush2.msra.mxu0 0.0
    %152 = vmatprep.subr.mxu0 0.0
    %153 = vmatpush2.msra.mxu0 0.0
    %154 = vmatprep.subr.mxu0 0.0
    %155 = vmatpush2.msra.mxu0 0.0
    %156 = vmatprep.subr.mxu0 0.0
    %157 = vmatpush2.msra.mxu0 0.0
    %158 = vmatprep.subr.mxu0 0.0
    %159 = vmatpush2.msra.mxu0 0.0
    %160 = vmatprep.subr.mxu0 0.0
    %161 = vmatpush2.msra.mxu0 0.0
    %162 = vmatprep.subr.mxu0 0.0
    %163 = vmatpush2.msra.mxu0 0.0
    %164 = vmatprep.subr.mxu0 0.0
    %165 = vmatpush2.msra.mxu0 0.0
    %166 = vmatprep.subr.mxu0 0.0
    %167 = vmatpush2.msra.mxu0 0.0
    %168 = vmatprep.subr.mxu0 0.0
    %169 = vmatpush2.msra.mxu0 0.0
    %170 = vmatprep.subr.mxu0 0.0
    %171 = vmatpush2.msra.mxu0 0.0
    %172 = vmatprep.mubr.f32.mxu0 0.0
    %173 = vmatmul.mubr.f32.gmra.mxu0 %v103
    %v174 = vpop.f32.mrf.mxu0
    %v175 = vadd.f32 0.0, %v174
    %v176 = vpop.f32.mrf.mxu0
    %177 = vmatprep.mubr.f32.mxu0 0.0
    %178 = vmatmul.mubr.f32.gmra.mxu0 %v106
    %v179 = vpop.f32.mrf.mxu0
    %v180 = vadd.f32 0.0, %v179
    %v181 = vpop.f32.mrf.mxu0
    %182 = vdwg.mxu0
    %183 = vst [vmem:[#allocation2] sm:$0xff] %v175
    %184 = vst [vmem:[#allocation2 + $0x8] sm:$0xff] %v180
    %v185 = vld [vmem:[#allocation10] sm:$0xff]
    %v186 = vld [vmem:[#allocation10 + $0x8] sm:$0xff]
    %v187 = vld [vmem:[#allocation10 + $0x10] sm:$0xff]
    %v188 = vld [vmem:[#allocation10 + $0x18] sm:$0xff]
    %v189 = vld [vmem:[%s3] sm:$0x1]
    %v190 = vld [vmem:[#allocation2] sm:$0x3]
    %v192 = vlaneseq
    %v193 = vshrl.u32 %v192, 7
    %v194 = vsub.s32 0, %v193
    %v195 = vrot.slane %v189, %v194
    %v197 = vadd.f32 %v190, %v195
    %v199 = vsel %vm101, 0.0, 0
    %201 = vmatprep.subr.mxu0 0.0
    %202 = vmatpush1.msra.mxu0 0.0
    %203 = vmatprep.subr.mxu0 0.0
    %204 = vmatpush1.msra.mxu0 0.0
    %205 = vmatprep.subr.mxu0 0.0
    %206 = vmatpush1.msra.mxu0 0.0
    %207 = vmatprep.subr.mxu0 0.0
    %208 = vmatpush1.msra.mxu0 0.0
    %209 = vmatprep.subr.mxu0 0.0
    %210 = vmatpush1.msra.mxu0 0.0
    %211 = vmatprep.subr.mxu0 0.0
    %212 = vmatpush1.msra.mxu0 0.0
    %213 = vmatprep.subr.mxu0 0.0
    %214 = vmatpush1.msra.mxu0 0.0
    %215 = vmatprep.subr.mxu0 0.0
    %216 = vmatpush1.msra.mxu0 0.0
    %217 = vmatprep.subr.mxu0 0.0
    %218 = vmatpush1.msra.mxu0 0.0
    %219 = vmatprep.subr.mxu0 0.0
    %220 = vmatpush1.msra.mxu0 0.0
    %221 = vmatprep.subr.mxu0 0.0
    %222 = vmatpush1.msra.mxu0 0.0
    %223 = vmatprep.subr.mxu0 0.0
    %224 = vmatpush1.msra.mxu0 0.0
    %225 = vmatprep.subr.mxu0 0.0
    %226 = vmatpush1.msra.mxu0 %v188
    %227 = vmatprep.subr.mxu0 0.0
    %228 = vmatpush1.msra.mxu0 %v187
    %229 = vmatprep.subr.mxu0 0.0
    %230 = vmatpush1.msra.mxu0 %v186
    %231 = vmatprep.subr.mxu0 0.0
    %232 = vmatpush1.msra.mxu0 %v185
    %233 = vmatprep.subr.mxu0 0.0
    %234 = vmatpush2.msra.mxu0 0.0
    %235 = vmatprep.subr.mxu0 0.0
    %236 = vmatpush2.msra.mxu0 0.0
    %237 = vmatprep.subr.mxu0 0.0
    %238 = vmatpush2.msra.mxu0 0.0
    %239 = vmatprep.subr.mxu0 0.0
    %240 = vmatpush2.msra.mxu0 0.0
    %241 = vmatprep.subr.mxu0 0.0
    %242 = vmatpush2.msra.mxu0 0.0
    %243 = vmatprep.subr.mxu0 0.0
    %244 = vmatpush2.msra.mxu0 0.0
    %245 = vmatprep.subr.mxu0 0.0
    %246 = vmatpush2.msra.mxu0 0.0
    %247 = vmatprep.subr.mxu0 0.0
    %248 = vmatpush2.msra.mxu0 0.0
    %249 = vmatprep.subr.mxu0 0.0
    %250 = vmatpush2.msra.mxu0 0.0
    %251 = vmatprep.subr.mxu0 0.0
    %252 = vmatpush2.msra.mxu0 0.0
    %253 = vmatprep.subr.mxu0 0.0
    %254 = vmatpush2.msra.mxu0 0.0
    %255 = vmatprep.subr.mxu0 0.0
    %256 = vmatpush2.msra.mxu0 0.0
    %257 = vmatprep.subr.mxu0 0.0
    %258 = vmatpush2.msra.mxu0 0.0
    %259 = vmatprep.subr.mxu0 0.0
    %260 = vmatpush2.msra.mxu0 0.0
    %261 = vmatprep.subr.mxu0 0.0
    %262 = vmatpush2.msra.mxu0 0.0
    %263 = vmatprep.subr.mxu0 0.0
    %264 = vmatpush2.msra.mxu0 0.0
    %265 = vmatprep.mubr.f32.mxu0 0.0
    %266 = vmatmul.mubr.f32.gmra.mxu0 %v199
    %v267 = vpop.f32.mrf.mxu0
    %v268 = vadd.f32 0.0, %v267
    %v269 = vpop.f32.mrf.mxu0
    %270 = vdwg.mxu0
    %v271 = vadd.f32 %v197, %v268
    %v272 = vxor.u32 %v271, 2147483648
    %v273 = vmul.f32 %v272, 1.442695
    %v274 = vpow.pop %v273
    %v275 = vadd.f32 %v274, 1.0
    %v276 = vrcp.pop %v275
    %v277 = vmul.f32 1.0, %v276
    %v278 = vtanh.pop %v271
    %v279 = vmul.f32 %v277, 0.0
    %281 = vrot.lane.b32.xlu0 %v278, 64
    %v282 = vpop.permute.xlu0 %281
    %v284 = vmul.f32 %v277, %v282
    %286 = vrot.lane.b32.xlu0 %v284, 32
    %v287 = vpop.permute.xlu0 %286
    %v289 = vadd.f32 %v279, %v287
    %v290 = vtanh.pop %v289
    %292 = vrot.lane.b32.xlu0 %v290, 64
    %v293 = vpop.permute.xlu0 %292
    %v295 = vmul.f32 %v277, %v293
    %297 = vrot.lane.b32.xlu0 %v295, 32
    %v298 = vpop.permute.xlu0 %297
    %vm300 = vcmask 254976
    %301 = vst.msk [vmem:[#allocation4] sm:$0x3] %vm300, %v298
    %v302 = vld [vmem:[#allocation2 + $0x2] sm:$0x3]
    %v303 = vadd.f32 %v302, %v195
    %v304 = vsel %vm101, %v298, 0
    %306 = vmatprep.subr.mxu0 0.0
    %307 = vmatpush1.msra.mxu0 0.0
    %308 = vmatprep.subr.mxu0 0.0
    %309 = vmatpush1.msra.mxu0 0.0
    %310 = vmatprep.subr.mxu0 0.0
    %311 = vmatpush1.msra.mxu0 0.0
    %312 = vmatprep.subr.mxu0 0.0
    %313 = vmatpush1.msra.mxu0 0.0
    %314 = vmatprep.subr.mxu0 0.0
    %315 = vmatpush1.msra.mxu0 0.0
    %316 = vmatprep.subr.mxu0 0.0
    %317 = vmatpush1.msra.mxu0 0.0
    %318 = vmatprep.subr.mxu0 0.0
    %319 = vmatpush1.msra.mxu0 0.0
    %320 = vmatprep.subr.mxu0 0.0
    %321 = vmatpush1.msra.mxu0 0.0
    %322 = vmatprep.subr.mxu0 0.0
    %323 = vmatpush1.msra.mxu0 0.0
    %324 = vmatprep.subr.mxu0 0.0
    %325 = vmatpush1.msra.mxu0 0.0
    %326 = vmatprep.subr.mxu0 0.0
    %327 = vmatpush1.msra.mxu0 0.0
    %328 = vmatprep.subr.mxu0 0.0
    %329 = vmatpush1.msra.mxu0 0.0
    %330 = vmatprep.subr.mxu0 0.0
    %331 = vmatpush1.msra.mxu0 %v188
    %332 = vmatprep.subr.mxu0 0.0
    %333 = vmatpush1.msra.mxu0 %v187
    %334 = vmatprep.subr.mxu0 0.0
    %335 = vmatpush1.msra.mxu0 %v186
    %336 = vmatprep.subr.mxu0 0.0
    %337 = vmatpush1.msra.mxu0 %v185
    %338 = vmatprep.subr.mxu0 0.0
    %339 = vmatpush2.msra.mxu0 0.0
    %340 = vmatprep.subr.mxu0 0.0
    %341 = vmatpush2.msra.mxu0 0.0
    %342 = vmatprep.subr.mxu0 0.0
    %343 = vmatpush2.msra.mxu0 0.0
    %344 = vmatprep.subr.mxu0 0.0
    %345 = vmatpush2.msra.mxu0 0.0
    %346 = vmatprep.subr.mxu0 0.0
    %347 = vmatpush2.msra.mxu0 0.0
    %348 = vmatprep.subr.mxu0 0.0
    %349 = vmatpush2.msra.mxu0 0.0
    %350 = vmatprep.subr.mxu0 0.0
    %351 = vmatpush2.msra.mxu0 0.0
    %352 = vmatprep.subr.mxu0 0.0
    %353 = vmatpush2.msra.mxu0 0.0
    %354 = vmatprep.subr.mxu0 0.0
    %355 = vmatpush2.msra.mxu0 0.0
    %356 = vmatprep.subr.mxu0 0.0
    %357 = vmatpush2.msra.mxu0 0.0
    %358 = vmatprep.subr.mxu0 0.0
    %359 = vmatpush2.msra.mxu0 0.0
    %360 = vmatprep.subr.mxu0 0.0
    %361 = vmatpush2.msra.mxu0 0.0
    %362 = vmatprep.subr.mxu0 0.0
    %363 = vmatpush2.msra.mxu0 0.0
    %364 = vmatprep.subr.mxu0 0.0
    %365 = vmatpush2.msra.mxu0 0.0
    %366 = vmatprep.subr.mxu0 0.0
    %367 = vmatpush2.msra.mxu0 0.0
    %368 = vmatprep.subr.mxu0 0.0
    %369 = vmatpush2.msra.mxu0 0.0
    %370 = vmatprep.mubr.f32.mxu0 0.0
    %371 = vmatmul.mubr.f32.gmra.mxu0 %v304
    %v372 = vpop.f32.mrf.mxu0
    %v373 = vadd.f32 0.0, %v372
    %v374 = vpop.f32.mrf.mxu0
    %375 = vdwg.mxu0
    %v376 = vadd.f32 %v303, %v373
    %v377 = vxor.u32 %v376, 2147483648
    %v378 = vmul.f32 %v377, 1.442695
    %v379 = vpow.pop %v378
    %v380 = vadd.f32 %v379, 1.0
    %v381 = vrcp.pop %v380
    %v382 = vmul.f32 1.0, %v381
    %v383 = vtanh.pop %v376
    %v384 = vmul.f32 %v382, %v289
    %386 = vrot.lane.b32.xlu0 %v383, 64
    %v387 = vpop.permute.xlu0 %386
    %v389 = vmul.f32 %v382, %v387
    %391 = vrot.lane.b32.xlu0 %v389, 32
    %v392 = vpop.permute.xlu0 %391
    %v394 = vadd.f32 %v384, %v392
    %v395 = vtanh.pop %v394
    %397 = vrot.lane.b32.xlu0 %v395, 64
    %v398 = vpop.permute.xlu0 %397
    %v400 = vmul.f32 %v382, %v398
    %402 = vrot.lane.b32.xlu0 %v400, 32
    %v403 = vpop.permute.xlu0 %402
    %405 = vst.msk [vmem:[#allocation4 + $0x2] sm:$0x3] %vm300, %v403
    %v406 = vld [vmem:[#allocation2 + $0x4] sm:$0x3]
    %v407 = vadd.f32 %v406, %v195
    %v408 = vsel %vm101, %v403, 0
    %410 = vmatprep.subr.mxu0 0.0
    %411 = vmatpush1.msra.mxu0 0.0
    %412 = vmatprep.subr.mxu0 0.0
    %413 = vmatpush1.msra.mxu0 0.0
    %414 = vmatprep.subr.mxu0 0.0
    %415 = vmatpush1.msra.mxu0 0.0
    %416 = vmatprep.subr.mxu0 0.0
    %417 = vmatpush1.msra.mxu0 0.0
    %418 = vmatprep.subr.mxu0 0.0
    %419 = vmatpush1.msra.mxu0 0.0
    %420 = vmatprep.subr.mxu0 0.0
    %421 = vmatpush1.msra.mxu0 0.0
    %422 = vmatprep.subr.mxu0 0.0
    %423 = vmatpush1.msra.mxu0 0.0
    %424 = vmatprep.subr.mxu0 0.0
    %425 = vmatpush1.msra.mxu0 0.0
    %426 = vmatprep.subr.mxu0 0.0
    %427 = vmatpush1.msra.mxu0 0.0
    %428 = vmatprep.subr.mxu0 0.0
    %429 = vmatpush1.msra.mxu0 0.0
    %430 = vmatprep.subr.mxu0 0.0
    %431 = vmatpush1.msra.mxu0 0.0
    %432 = vmatprep.subr.mxu0 0.0
    %433 = vmatpush1.msra.mxu0 0.0
    %434 = vmatprep.subr.mxu0 0.0
    %435 = vmatpush1.msra.mxu0 %v188
    %436 = vmatprep.subr.mxu0 0.0
    %437 = vmatpush1.msra.mxu0 %v187
    %438 = vmatprep.subr.mxu0 0.0
    %439 = vmatpush1.msra.mxu0 %v186
    %440 = vmatprep.subr.mxu0 0.0
    %441 = vmatpush1.msra.mxu0 %v185
    %442 = vmatprep.subr.mxu0 0.0
    %443 = vmatpush2.msra.mxu0 0.0
    %444 = vmatprep.subr.mxu0 0.0
    %445 = vmatpush2.msra.mxu0 0.0
    %446 = vmatprep.subr.mxu0 0.0
    %447 = vmatpush2.msra.mxu0 0.0
    %448 = vmatprep.subr.mxu0 0.0
    %449 = vmatpush2.msra.mxu0 0.0
    %450 = vmatprep.subr.mxu0 0.0
    %451 = vmatpush2.msra.mxu0 0.0
    %452 = vmatprep.subr.mxu0 0.0
    %453 = vmatpush2.msra.mxu0 0.0
    %454 = vmatprep.subr.mxu0 0.0
    %455 = vmatpush2.msra.mxu0 0.0
    %456 = vmatprep.subr.mxu0 0.0
    %457 = vmatpush2.msra.mxu0 0.0
    %458 = vmatprep.subr.mxu0 0.0
    %459 = vmatpush2.msra.mxu0 0.0
    %460 = vmatprep.subr.mxu0 0.0
    %461 = vmatpush2.msra.mxu0 0.0
    %462 = vmatprep.subr.mxu0 0.0
    %463 = vmatpush2.msra.mxu0 0.0
    %464 = vmatprep.subr.mxu0 0.0
    %465 = vmatpush2.msra.mxu0 0.0
    %466 = vmatprep.subr.mxu0 0.0
    %467 = vmatpush2.msra.mxu0 0.0
    %468 = vmatprep.subr.mxu0 0.0
    %469 = vmatpush2.msra.mxu0 0.0
    %470 = vmatprep.subr.mxu0 0.0
    %471 = vmatpush2.msra.mxu0 0.0
    %472 = vmatprep.subr.mxu0 0.0
    %473 = vmatpush2.msra.mxu0 0.0
    %474 = vmatprep.mubr.f32.mxu0 0.0
    %475 = vmatmul.mubr.f32.gmra.mxu0 %v408
    %v476 = vpop.f32.mrf.mxu0
    %v477 = vadd.f32 0.0, %v476
    %v478 = vpop.f32.mrf.mxu0
    %479 = vdwg.mxu0
    %v480 = vadd.f32 %v407, %v477
    %v481 = vxor.u32 %v480, 2147483648
    %v482 = vmul.f32 %v481, 1.442695
    %v483 = vpow.pop %v482
    %v484 = vadd.f32 %v483, 1.0
    %v485 = vrcp.pop %v484
    %v486 = vmul.f32 1.0, %v485
    %v487 = vtanh.pop %v480
    %v488 = vmul.f32 %v486, %v394
    %490 = vrot.lane.b32.xlu0 %v487, 64
    %v491 = vpop.permute.xlu0 %490
    %v493 = vmul.f32 %v486, %v491
    %495 = vrot.lane.b32.xlu0 %v493, 32
    %v496 = vpop.permute.xlu0 %495
    %v498 = vadd.f32 %v488, %v496
    %v499 = vtanh.pop %v498
    %501 = vrot.lane.b32.xlu0 %v499, 64
    %v502 = vpop.permute.xlu0 %501
    %v504 = vmul.f32 %v486, %v502
    %506 = vrot.lane.b32.xlu0 %v504, 32
    %v507 = vpop.permute.xlu0 %506
    %509 = vst.msk [vmem:[#allocation4 + $0x4] sm:$0x3] %vm300, %v507
    %v510 = vld [vmem:[#allocation2 + $0x6] sm:$0x3]
    %v511 = vadd.f32 %v510, %v195
    %v512 = vsel %vm101, %v507, 0
    %514 = vmatprep.subr.mxu0 0.0
    %515 = vmatpush1.msra.mxu0 0.0
    %516 = vmatprep.subr.mxu0 0.0
    %517 = vmatpush1.msra.mxu0 0.0
    %518 = vmatprep.subr.mxu0 0.0
    %519 = vmatpush1.msra.mxu0 0.0
    %520 = vmatprep.subr.mxu0 0.0
    %521 = vmatpush1.msra.mxu0 0.0
    %522 = vmatprep.subr.mxu0 0.0
    %523 = vmatpush1.msra.mxu0 0.0
    %524 = vmatprep.subr.mxu0 0.0
    %525 = vmatpush1.msra.mxu0 0.0
    %526 = vmatprep.subr.mxu0 0.0
    %527 = vmatpush1.msra.mxu0 0.0
    %528 = vmatprep.subr.mxu0 0.0
    %529 = vmatpush1.msra.mxu0 0.0
    %530 = vmatprep.subr.mxu0 0.0
    %531 = vmatpush1.msra.mxu0 0.0
    %532 = vmatprep.subr.mxu0 0.0
    %533 = vmatpush1.msra.mxu0 0.0
    %534 = vmatprep.subr.mxu0 0.0
    %535 = vmatpush1.msra.mxu0 0.0
    %536 = vmatprep.subr.mxu0 0.0
    %537 = vmatpush1.msra.mxu0 0.0
    %538 = vmatprep.subr.mxu0 0.0
    %539 = vmatpush1.msra.mxu0 %v188
    %540 = vmatprep.subr.mxu0 0.0
    %541 = vmatpush1.msra.mxu0 %v187
    %542 = vmatprep.subr.mxu0 0.0
    %543 = vmatpush1.msra.mxu0 %v186
    %544 = vmatprep.subr.mxu0 0.0
    %545 = vmatpush1.msra.mxu0 %v185
    %546 = vmatprep.subr.mxu0 0.0
    %547 = vmatpush2.msra.mxu0 0.0
    %548 = vmatprep.subr.mxu0 0.0
    %549 = vmatpush2.msra.mxu0 0.0
    %550 = vmatprep.subr.mxu0 0.0
    %551 = vmatpush2.msra.mxu0 0.0
    %552 = vmatprep.subr.mxu0 0.0
    %553 = vmatpush2.msra.mxu0 0.0
    %554 = vmatprep.subr.mxu0 0.0
    %555 = vmatpush2.msra.mxu0 0.0
    %556 = vmatprep.subr.mxu0 0.0
    %557 = vmatpush2.msra.mxu0 0.0
    %558 = vmatprep.subr.mxu0 0.0
    %559 = vmatpush2.msra.mxu0 0.0
    %560 = vmatprep.subr.mxu0 0.0
    %561 = vmatpush2.msra.mxu0 0.0
    %562 = vmatprep.subr.mxu0 0.0
    %563 = vmatpush2.msra.mxu0 0.0
    %564 = vmatprep.subr.mxu0 0.0
    %565 = vmatpush2.msra.mxu0 0.0
    %566 = vmatprep.subr.mxu0 0.0
    %567 = vmatpush2.msra.mxu0 0.0
    %568 = vmatprep.subr.mxu0 0.0
    %569 = vmatpush2.msra.mxu0 0.0
    %570 = vmatprep.subr.mxu0 0.0
    %571 = vmatpush2.msra.mxu0 0.0
    %572 = vmatprep.subr.mxu0 0.0
    %573 = vmatpush2.msra.mxu0 0.0
    %574 = vmatprep.subr.mxu0 0.0
    %575 = vmatpush2.msra.mxu0 0.0
    %576 = vmatprep.subr.mxu0 0.0
    %577 = vmatpush2.msra.mxu0 0.0
    %578 = vmatprep.mubr.f32.mxu0 0.0
    %579 = vmatmul.mubr.f32.gmra.mxu0 %v512
    %v580 = vpop.f32.mrf.mxu0
    %v581 = vadd.f32 0.0, %v580
    %v582 = vpop.f32.mrf.mxu0
    %583 = vdwg.mxu0
    %v584 = vadd.f32 %v511, %v581
    %v585 = vxor.u32 %v584, 2147483648
    %v586 = vmul.f32 %v585, 1.442695
    %v587 = vpow.pop %v586
    %v588 = vadd.f32 %v587, 1.0
    %v589 = vrcp.pop %v588
    %v590 = vmul.f32 1.0, %v589
    %v591 = vtanh.pop %v584
    %v592 = vmul.f32 %v590, %v498
    %594 = vrot.lane.b32.xlu0 %v591, 64
    %v595 = vpop.permute.xlu0 %594
    %v597 = vmul.f32 %v590, %v595
    %599 = vrot.lane.b32.xlu0 %v597, 32
    %v600 = vpop.permute.xlu0 %599
    %v602 = vadd.f32 %v592, %v600
    %v603 = vtanh.pop %v602
    %605 = vrot.lane.b32.xlu0 %v603, 64
    %v606 = vpop.permute.xlu0 %605
    %v608 = vmul.f32 %v590, %v606
    %610 = vrot.lane.b32.xlu0 %v608, 32
    %v611 = vpop.permute.xlu0 %610
    %613 = vst.msk [vmem:[#allocation4 + $0x6] sm:$0x3] %vm300, %v611
    %v614 = vld [vmem:[#allocation2 + $0x8] sm:$0x3]
    %v615 = vadd.f32 %v614, %v195
    %v616 = vsel %vm101, %v611, 0
    %618 = vmatprep.subr.mxu0 0.0
    %619 = vmatpush1.msra.mxu0 0.0
    %620 = vmatprep.subr.mxu0 0.0
    %621 = vmatpush1.msra.mxu0 0.0
    %622 = vmatprep.subr.mxu0 0.0
    %623 = vmatpush1.msra.mxu0 0.0
    %624 = vmatprep.subr.mxu0 0.0
    %625 = vmatpush1.msra.mxu0 0.0
    %626 = vmatprep.subr.mxu0 0.0
    %627 = vmatpush1.msra.mxu0 0.0
    %628 = vmatprep.subr.mxu0 0.0
    %629 = vmatpush1.msra.mxu0 0.0
    %630 = vmatprep.subr.mxu0 0.0
    %631 = vmatpush1.msra.mxu0 0.0
    %632 = vmatprep.subr.mxu0 0.0
    %633 = vmatpush1.msra.mxu0 0.0
    %634 = vmatprep.subr.mxu0 0.0
    %635 = vmatpush1.msra.mxu0 0.0
    %636 = vmatprep.subr.mxu0 0.0
    %637 = vmatpush1.msra.mxu0 0.0
    %638 = vmatprep.subr.mxu0 0.0
    %639 = vmatpush1.msra.mxu0 0.0
    %640 = vmatprep.subr.mxu0 0.0
    %641 = vmatpush1.msra.mxu0 0.0
    %642 = vmatprep.subr.mxu0 0.0
    %643 = vmatpush1.msra.mxu0 %v188
    %644 = vmatprep.subr.mxu0 0.0
    %645 = vmatpush1.msra.mxu0 %v187
    %646 = vmatprep.subr.mxu0 0.0
    %647 = vmatpush1.msra.mxu0 %v186
    %648 = vmatprep.subr.mxu0 0.0
    %649 = vmatpush1.msra.mxu0 %v185
    %650 = vmatprep.subr.mxu0 0.0
    %651 = vmatpush2.msra.mxu0 0.0
    %652 = vmatprep.subr.mxu0 0.0
    %653 = vmatpush2.msra.mxu0 0.0
    %654 = vmatprep.subr.mxu0 0.0
    %655 = vmatpush2.msra.mxu0 0.0
    %656 = vmatprep.subr.mxu0 0.0
    %657 = vmatpush2.msra.mxu0 0.0
    %658 = vmatprep.subr.mxu0 0.0
    %659 = vmatpush2.msra.mxu0 0.0
    %660 = vmatprep.subr.mxu0 0.0
    %661 = vmatpush2.msra.mxu0 0.0
    %662 = vmatprep.subr.mxu0 0.0
    %663 = vmatpush2.msra.mxu0 0.0
    %664 = vmatprep.subr.mxu0 0.0
    %665 = vmatpush2.msra.mxu0 0.0
    %666 = vmatprep.subr.mxu0 0.0
    %667 = vmatpush2.msra.mxu0 0.0
    %668 = vmatprep.subr.mxu0 0.0
    %669 = vmatpush2.msra.mxu0 0.0
    %670 = vmatprep.subr.mxu0 0.0
    %671 = vmatpush2.msra.mxu0 0.0
    %672 = vmatprep.subr.mxu0 0.0
    %673 = vmatpush2.msra.mxu0 0.0
    %674 = vmatprep.subr.mxu0 0.0
    %675 = vmatpush2.msra.mxu0 0.0
    %676 = vmatprep.subr.mxu0 0.0
    %677 = vmatpush2.msra.mxu0 0.0
    %678 = vmatprep.subr.mxu0 0.0
    %679 = vmatpush2.msra.mxu0 0.0
    %680 = vmatprep.subr.mxu0 0.0
    %681 = vmatpush2.msra.mxu0 0.0
    %682 = vmatprep.mubr.f32.mxu0 0.0
    %683 = vmatmul.mubr.f32.gmra.mxu0 %v616
    %v684 = vpop.f32.mrf.mxu0
    %v685 = vadd.f32 0.0, %v684
    %v686 = vpop.f32.mrf.mxu0
    %687 = vdwg.mxu0
    %v688 = vadd.f32 %v615, %v685
    %v689 = vxor.u32 %v688, 2147483648
    %v690 = vmul.f32 %v689, 1.442695
    %v691 = vpow.pop %v690
    %v692 = vadd.f32 %v691, 1.0
    %v693 = vrcp.pop %v692
    %v694 = vmul.f32 1.0, %v693
    %v695 = vtanh.pop %v688
    %v696 = vmul.f32 %v694, %v602
    %698 = vrot.lane.b32.xlu0 %v695, 64
    %v699 = vpop.permute.xlu0 %698
    %v701 = vmul.f32 %v694, %v699
    %703 = vrot.lane.b32.xlu0 %v701, 32
    %v704 = vpop.permute.xlu0 %703
    %v706 = vadd.f32 %v696, %v704
    %v707 = vtanh.pop %v706
    %709 = vrot.lane.b32.xlu0 %v707, 64
    %v710 = vpop.permute.xlu0 %709
    %v712 = vmul.f32 %v694, %v710
    %714 = vrot.lane.b32.xlu0 %v712, 32
    %v715 = vpop.permute.xlu0 %714
    %717 = vst.msk [vmem:[#allocation4 + $0x8] sm:$0x3] %vm300, %v715
    %v718 = vld [vmem:[#allocation2 + $0xa] sm:$0x3]
    %v719 = vadd.f32 %v718, %v195
    %v720 = vsel %vm101, %v715, 0
    %722 = vmatprep.subr.mxu0 0.0
    %723 = vmatpush1.msra.mxu0 0.0
    %724 = vmatprep.subr.mxu0 0.0
    %725 = vmatpush1.msra.mxu0 0.0
    %726 = vmatprep.subr.mxu0 0.0
    %727 = vmatpush1.msra.mxu0 0.0
    %728 = vmatprep.subr.mxu0 0.0
    %729 = vmatpush1.msra.mxu0 0.0
    %730 = vmatprep.subr.mxu0 0.0
    %731 = vmatpush1.msra.mxu0 0.0
    %732 = vmatprep.subr.mxu0 0.0
    %733 = vmatpush1.msra.mxu0 0.0
    %734 = vmatprep.subr.mxu0 0.0
    %735 = vmatpush1.msra.mxu0 0.0
    %736 = vmatprep.subr.mxu0 0.0
    %737 = vmatpush1.msra.mxu0 0.0
    %738 = vmatprep.subr.mxu0 0.0
    %739 = vmatpush1.msra.mxu0 0.0
    %740 = vmatprep.subr.mxu0 0.0
    %741 = vmatpush1.msra.mxu0 0.0
    %742 = vmatprep.subr.mxu0 0.0
    %743 = vmatpush1.msra.mxu0 0.0
    %744 = vmatprep.subr.mxu0 0.0
    %745 = vmatpush1.msra.mxu0 0.0
    %746 = vmatprep.subr.mxu0 0.0
    %747 = vmatpush1.msra.mxu0 %v188
    %748 = vmatprep.subr.mxu0 0.0
    %749 = vmatpush1.msra.mxu0 %v187
    %750 = vmatprep.subr.mxu0 0.0
    %751 = vmatpush1.msra.mxu0 %v186
    %752 = vmatprep.subr.mxu0 0.0
    %753 = vmatpush1.msra.mxu0 %v185
    %754 = vmatprep.subr.mxu0 0.0
    %755 = vmatpush2.msra.mxu0 0.0
    %756 = vmatprep.subr.mxu0 0.0
    %757 = vmatpush2.msra.mxu0 0.0
    %758 = vmatprep.subr.mxu0 0.0
    %759 = vmatpush2.msra.mxu0 0.0
    %760 = vmatprep.subr.mxu0 0.0
    %761 = vmatpush2.msra.mxu0 0.0
    %762 = vmatprep.subr.mxu0 0.0
    %763 = vmatpush2.msra.mxu0 0.0
    %764 = vmatprep.subr.mxu0 0.0
    %765 = vmatpush2.msra.mxu0 0.0
    %766 = vmatprep.subr.mxu0 0.0
    %767 = vmatpush2.msra.mxu0 0.0
    %768 = vmatprep.subr.mxu0 0.0
    %769 = vmatpush2.msra.mxu0 0.0
    %770 = vmatprep.subr.mxu0 0.0
    %771 = vmatpush2.msra.mxu0 0.0
    %772 = vmatprep.subr.mxu0 0.0
    %773 = vmatpush2.msra.mxu0 0.0
    %774 = vmatprep.subr.mxu0 0.0
    %775 = vmatpush2.msra.mxu0 0.0
    %776 = vmatprep.subr.mxu0 0.0
    %777 = vmatpush2.msra.mxu0 0.0
    %778 = vmatprep.subr.mxu0 0.0
    %779 = vmatpush2.msra.mxu0 0.0
    %780 = vmatprep.subr.mxu0 0.0
    %781 = vmatpush2.msra.mxu0 0.0
    %782 = vmatprep.subr.mxu0 0.0
    %783 = vmatpush2.msra.mxu0 0.0
    %784 = vmatprep.subr.mxu0 0.0
    %785 = vmatpush2.msra.mxu0 0.0
    %786 = vmatprep.mubr.f32.mxu0 0.0
    %787 = vmatmul.mubr.f32.gmra.mxu0 %v720
    %v788 = vpop.f32.mrf.mxu0
    %v789 = vadd.f32 0.0, %v788
    %v790 = vpop.f32.mrf.mxu0
    %791 = vdwg.mxu0
    %v792 = vadd.f32 %v719, %v789
    %v793 = vxor.u32 %v792, 2147483648
    %v794 = vmul.f32 %v793, 1.442695
    %v795 = vpow.pop %v794
    %v796 = vadd.f32 %v795, 1.0
    %v797 = vrcp.pop %v796
    %v798 = vmul.f32 1.0, %v797
    %v799 = vtanh.pop %v792
    %v800 = vmul.f32 %v798, %v706
    %802 = vrot.lane.b32.xlu0 %v799, 64
    %v803 = vpop.permute.xlu0 %802
    %v805 = vmul.f32 %v798, %v803
    %807 = vrot.lane.b32.xlu0 %v805, 32
    %v808 = vpop.permute.xlu0 %807
    %v810 = vadd.f32 %v800, %v808
    %v811 = vtanh.pop %v810
    %813 = vrot.lane.b32.xlu0 %v811, 64
    %v814 = vpop.permute.xlu0 %813
    %v816 = vmul.f32 %v798, %v814
    %818 = vrot.lane.b32.xlu0 %v816, 32
    %v819 = vpop.permute.xlu0 %818
    %821 = vst.msk [vmem:[#allocation4 + $0xa] sm:$0x3] %vm300, %v819
    %v822 = vld [vmem:[#allocation2 + $0xc] sm:$0x3]
    %v823 = vadd.f32 %v822, %v195
    %v824 = vsel %vm101, %v819, 0
    %826 = vmatprep.subr.mxu0 0.0
    %827 = vmatpush1.msra.mxu0 0.0
    %828 = vmatprep.subr.mxu0 0.0
    %829 = vmatpush1.msra.mxu0 0.0
    %830 = vmatprep.subr.mxu0 0.0
    %831 = vmatpush1.msra.mxu0 0.0
    %832 = vmatprep.subr.mxu0 0.0
    %833 = vmatpush1.msra.mxu0 0.0
    %834 = vmatprep.subr.mxu0 0.0
    %835 = vmatpush1.msra.mxu0 0.0
    %836 = vmatprep.subr.mxu0 0.0
    %837 = vmatpush1.msra.mxu0 0.0
    %838 = vmatprep.subr.mxu0 0.0
    %839 = vmatpush1.msra.mxu0 0.0
    %840 = vmatprep.subr.mxu0 0.0
    %841 = vmatpush1.msra.mxu0 0.0
    %842 = vmatprep.subr.mxu0 0.0
    %843 = vmatpush1.msra.mxu0 0.0
    %844 = vmatprep.subr.mxu0 0.0
    %845 = vmatpush1.msra.mxu0 0.0
    %846 = vmatprep.subr.mxu0 0.0
    %847 = vmatpush1.msra.mxu0 0.0
    %848 = vmatprep.subr.mxu0 0.0
    %849 = vmatpush1.msra.mxu0 0.0
    %850 = vmatprep.subr.mxu0 0.0
    %851 = vmatpush1.msra.mxu0 %v188
    %852 = vmatprep.subr.mxu0 0.0
    %853 = vmatpush1.msra.mxu0 %v187
    %854 = vmatprep.subr.mxu0 0.0
    %855 = vmatpush1.msra.mxu0 %v186
    %856 = vmatprep.subr.mxu0 0.0
    %857 = vmatpush1.msra.mxu0 %v185
    %858 = vmatprep.subr.mxu0 0.0
    %859 = vmatpush2.msra.mxu0 0.0
    %860 = vmatprep.subr.mxu0 0.0
    %861 = vmatpush2.msra.mxu0 0.0
    %862 = vmatprep.subr.mxu0 0.0
    %863 = vmatpush2.msra.mxu0 0.0
    %864 = vmatprep.subr.mxu0 0.0
    %865 = vmatpush2.msra.mxu0 0.0
    %866 = vmatprep.subr.mxu0 0.0
    %867 = vmatpush2.msra.mxu0 0.0
    %868 = vmatprep.subr.mxu0 0.0
    %869 = vmatpush2.msra.mxu0 0.0
    %870 = vmatprep.subr.mxu0 0.0
    %871 = vmatpush2.msra.mxu0 0.0
    %872 = vmatprep.subr.mxu0 0.0
    %873 = vmatpush2.msra.mxu0 0.0
    %874 = vmatprep.subr.mxu0 0.0
    %875 = vmatpush2.msra.mxu0 0.0
    %876 = vmatprep.subr.mxu0 0.0
    %877 = vmatpush2.msra.mxu0 0.0
    %878 = vmatprep.subr.mxu0 0.0
    %879 = vmatpush2.msra.mxu0 0.0
    %880 = vmatprep.subr.mxu0 0.0
    %881 = vmatpush2.msra.mxu0 0.0
    %882 = vmatprep.subr.mxu0 0.0
    %883 = vmatpush2.msra.mxu0 0.0
    %884 = vmatprep.subr.mxu0 0.0
    %885 = vmatpush2.msra.mxu0 0.0
    %886 = vmatprep.subr.mxu0 0.0
    %887 = vmatpush2.msra.mxu0 0.0
    %888 = vmatprep.subr.mxu0 0.0
    %889 = vmatpush2.msra.mxu0 0.0
    %890 = vmatprep.mubr.f32.mxu0 0.0
    %891 = vmatmul.mubr.f32.gmra.mxu0 %v824
    %v892 = vpop.f32.mrf.mxu0
    %v893 = vadd.f32 0.0, %v892
    %v894 = vpop.f32.mrf.mxu0
    %895 = vdwg.mxu0
    %v896 = vadd.f32 %v823, %v893
    %v897 = vxor.u32 %v896, 2147483648
    %v898 = vmul.f32 %v897, 1.442695
    %v899 = vpow.pop %v898
    %v900 = vadd.f32 %v899, 1.0
    %v901 = vrcp.pop %v900
    %v902 = vmul.f32 1.0, %v901
    %v903 = vtanh.pop %v896
    %v904 = vmul.f32 %v902, %v810
    %906 = vrot.lane.b32.xlu0 %v903, 64
    %v907 = vpop.permute.xlu0 %906
    %v909 = vmul.f32 %v902, %v907
    %911 = vrot.lane.b32.xlu0 %v909, 32
    %v912 = vpop.permute.xlu0 %911
    %v914 = vadd.f32 %v904, %v912
    %v915 = vtanh.pop %v914
    %917 = vrot.lane.b32.xlu0 %v915, 64
    %v918 = vpop.permute.xlu0 %917
    %v920 = vmul.f32 %v902, %v918
    %922 = vrot.lane.b32.xlu0 %v920, 32
    %v923 = vpop.permute.xlu0 %922
    %925 = vst.msk [vmem:[#allocation4 + $0xc] sm:$0x3] %vm300, %v923
    %v926 = vld [vmem:[#allocation2 + $0xe] sm:$0x3]
    %v927 = vadd.f32 %v926, %v195
    %v928 = vsel %vm101, %v923, 0
    %930 = vmatprep.subr.mxu0 0.0
    %931 = vmatpush1.msra.mxu0 0.0
    %932 = vmatprep.subr.mxu0 0.0
    %933 = vmatpush1.msra.mxu0 0.0
    %934 = vmatprep.subr.mxu0 0.0
    %935 = vmatpush1.msra.mxu0 0.0
    %936 = vmatprep.subr.mxu0 0.0
    %937 = vmatpush1.msra.mxu0 0.0
    %938 = vmatprep.subr.mxu0 0.0
    %939 = vmatpush1.msra.mxu0 0.0
    %940 = vmatprep.subr.mxu0 0.0
    %941 = vmatpush1.msra.mxu0 0.0
    %942 = vmatprep.subr.mxu0 0.0
    %943 = vmatpush1.msra.mxu0 0.0
    %944 = vmatprep.subr.mxu0 0.0
    %945 = vmatpush1.msra.mxu0 0.0
    %946 = vmatprep.subr.mxu0 0.0
    %947 = vmatpush1.msra.mxu0 0.0
    %948 = vmatprep.subr.mxu0 0.0
    %949 = vmatpush1.msra.mxu0 0.0
    %950 = vmatprep.subr.mxu0 0.0
    %951 = vmatpush1.msra.mxu0 0.0
    %952 = vmatprep.subr.mxu0 0.0
    %953 = vmatpush1.msra.mxu0 0.0
    %954 = vmatprep.subr.mxu0 0.0
    %955 = vmatpush1.msra.mxu0 %v188
    %956 = vmatprep.subr.mxu0 0.0
    %957 = vmatpush1.msra.mxu0 %v187
    %958 = vmatprep.subr.mxu0 0.0
    %959 = vmatpush1.msra.mxu0 %v186
    %960 = vmatprep.subr.mxu0 0.0
    %961 = vmatpush1.msra.mxu0 %v185
    %962 = vmatprep.subr.mxu0 0.0
    %963 = vmatpush2.msra.mxu0 0.0
    %964 = vmatprep.subr.mxu0 0.0
    %965 = vmatpush2.msra.mxu0 0.0
    %966 = vmatprep.subr.mxu0 0.0
    %967 = vmatpush2.msra.mxu0 0.0
    %968 = vmatprep.subr.mxu0 0.0
    %969 = vmatpush2.msra.mxu0 0.0
    %970 = vmatprep.subr.mxu0 0.0
    %971 = vmatpush2.msra.mxu0 0.0
    %972 = vmatprep.subr.mxu0 0.0
    %973 = vmatpush2.msra.mxu0 0.0
    %974 = vmatprep.subr.mxu0 0.0
    %975 = vmatpush2.msra.mxu0 0.0
    %976 = vmatprep.subr.mxu0 0.0
    %977 = vmatpush2.msra.mxu0 0.0
    %978 = vmatprep.subr.mxu0 0.0
    %979 = vmatpush2.msra.mxu0 0.0
    %980 = vmatprep.subr.mxu0 0.0
    %981 = vmatpush2.msra.mxu0 0.0
    %982 = vmatprep.subr.mxu0 0.0
    %983 = vmatpush2.msra.mxu0 0.0
    %984 = vmatprep.subr.mxu0 0.0
    %985 = vmatpush2.msra.mxu0 0.0
    %986 = vmatprep.subr.mxu0 0.0
    %987 = vmatpush2.msra.mxu0 0.0
    %988 = vmatprep.subr.mxu0 0.0
    %989 = vmatpush2.msra.mxu0 0.0
    %990 = vmatprep.subr.mxu0 0.0
    %991 = vmatpush2.msra.mxu0 0.0
    %992 = vmatprep.subr.mxu0 0.0
    %993 = vmatpush2.msra.mxu0 0.0
    %994 = vmatprep.mubr.f32.mxu0 0.0
    %995 = vmatmul.mubr.f32.gmra.mxu0 %v928
    %v996 = vpop.f32.mrf.mxu0
    %v997 = vadd.f32 0.0, %v996
    %v998 = vpop.f32.mrf.mxu0
    %999 = vdwg.mxu0
    %v1000 = vadd.f32 %v927, %v997
    %v1001 = vxor.u32 %v1000, 2147483648
    %v1002 = vmul.f32 %v1001, 1.442695
    %v1003 = vpow.pop %v1002
    %v1004 = vadd.f32 %v1003, 1.0
    %v1005 = vrcp.pop %v1004
    %v1006 = vmul.f32 1.0, %v1005
    %v1007 = vtanh.pop %v1000
    %v1008 = vmul.f32 %v1006, %v914
    %1010 = vrot.lane.b32.xlu0 %v1007, 64
    %v1011 = vpop.permute.xlu0 %1010
    %v1013 = vmul.f32 %v1006, %v1011
    %1015 = vrot.lane.b32.xlu0 %v1013, 32
    %v1016 = vpop.permute.xlu0 %1015
    %v1018 = vadd.f32 %v1008, %v1016
    %v1019 = vtanh.pop %v1018
    %1021 = vrot.lane.b32.xlu0 %v1019, 64
    %v1022 = vpop.permute.xlu0 %1021
    %v1024 = vmul.f32 %v1006, %v1022
    %1026 = vrot.lane.b32.xlu0 %v1024, 32
    %v1027 = vpop.permute.xlu0 %1026
    %1029 = vst.msk [vmem:[#allocation4 + $0xe] sm:$0x3] %vm300, %v1027
    %v1030 = vld [vmem:[#allocation4] sm:$0xff]
    %v1031 = vld [vmem:[#allocation4 + $0x8] sm:$0xff]
    %v1032 = vld [vmem:[#allocation11] sm:$0xff]
    %v1033 = vld [vmem:[#allocation11 + $0x8] sm:$0xff]
    %v1034 = vld [vmem:[#allocation11 + $0x10] sm:$0xff]
    %v1035 = vld [vmem:[#allocation11 + $0x18] sm:$0xff]
    %v1037 = vsel %vm101, %v1030, 0
    %v1040 = vsel %vm101, %v1031, 0
    %1042 = vmatprep.subr.mxu0 0.0
    %1043 = vmatpush1.msra.mxu0 0.0
    %1044 = vmatprep.subr.mxu0 0.0
    %1045 = vmatpush1.msra.mxu0 0.0
    %1046 = vmatprep.subr.mxu0 0.0
    %1047 = vmatpush1.msra.mxu0 0.0
    %1048 = vmatprep.subr.mxu0 0.0
    %1049 = vmatpush1.msra.mxu0 0.0
    %1050 = vmatprep.subr.mxu0 0.0
    %1051 = vmatpush1.msra.mxu0 0.0
    %1052 = vmatprep.subr.mxu0 0.0
    %1053 = vmatpush1.msra.mxu0 0.0
    %1054 = vmatprep.subr.mxu0 0.0
    %1055 = vmatpush1.msra.mxu0 0.0
    %1056 = vmatprep.subr.mxu0 0.0
    %1057 = vmatpush1.msra.mxu0 0.0
    %1058 = vmatprep.subr.mxu0 0.0
    %1059 = vmatpush1.msra.mxu0 0.0
    %1060 = vmatprep.subr.mxu0 0.0
    %1061 = vmatpush1.msra.mxu0 0.0
    %1062 = vmatprep.subr.mxu0 0.0
    %1063 = vmatpush1.msra.mxu0 0.0
    %1064 = vmatprep.subr.mxu0 0.0
    %1065 = vmatpush1.msra.mxu0 0.0
    %1066 = vmatprep.subr.mxu0 0.0
    %1067 = vmatpush1.msra.mxu0 %v1035
    %1068 = vmatprep.subr.mxu0 0.0
    %1069 = vmatpush1.msra.mxu0 %v1034
    %1070 = vmatprep.subr.mxu0 0.0
    %1071 = vmatpush1.msra.mxu0 %v1033
    %1072 = vmatprep.subr.mxu0 0.0
    %1073 = vmatpush1.msra.mxu0 %v1032
    %1074 = vmatprep.subr.mxu0 0.0
    %1075 = vmatpush2.msra.mxu0 0.0
    %1076 = vmatprep.subr.mxu0 0.0
    %1077 = vmatpush2.msra.mxu0 0.0
    %1078 = vmatprep.subr.mxu0 0.0
    %1079 = vmatpush2.msra.mxu0 0.0
    %1080 = vmatprep.subr.mxu0 0.0
    %1081 = vmatpush2.msra.mxu0 0.0
    %1082 = vmatprep.subr.mxu0 0.0
    %1083 = vmatpush2.msra.mxu0 0.0
    %1084 = vmatprep.subr.mxu0 0.0
    %1085 = vmatpush2.msra.mxu0 0.0
    %1086 = vmatprep.subr.mxu0 0.0
    %1087 = vmatpush2.msra.mxu0 0.0
    %1088 = vmatprep.subr.mxu0 0.0
    %1089 = vmatpush2.msra.mxu0 0.0
    %1090 = vmatprep.subr.mxu0 0.0
    %1091 = vmatpush2.msra.mxu0 0.0
    %1092 = vmatprep.subr.mxu0 0.0
    %1093 = vmatpush2.msra.mxu0 0.0
    %1094 = vmatprep.subr.mxu0 0.0
    %1095 = vmatpush2.msra.mxu0 0.0
    %1096 = vmatprep.subr.mxu0 0.0
    %1097 = vmatpush2.msra.mxu0 0.0
    %1098 = vmatprep.subr.mxu0 0.0
    %1099 = vmatpush2.msra.mxu0 0.0
    %1100 = vmatprep.subr.mxu0 0.0
    %1101 = vmatpush2.msra.mxu0 0.0
    %1102 = vmatprep.subr.mxu0 0.0
    %1103 = vmatpush2.msra.mxu0 0.0
    %1104 = vmatprep.subr.mxu0 0.0
    %1105 = vmatpush2.msra.mxu0 0.0
    %1106 = vmatprep.mubr.f32.mxu0 0.0
    %1107 = vmatmul.mubr.f32.gmra.mxu0 %v1037
    %v1108 = vpop.f32.mrf.mxu0
    %v1109 = vadd.f32 0.0, %v1108
    %v1110 = vpop.f32.mrf.mxu0
    %1111 = vmatprep.mubr.f32.mxu0 0.0
    %1112 = vmatmul.mubr.f32.gmra.mxu0 %v1040
    %v1113 = vpop.f32.mrf.mxu0
    %v1114 = vadd.f32 0.0, %v1113
    %v1115 = vpop.f32.mrf.mxu0
    %1116 = vdwg.mxu0
    %1117 = vst [vmem:[#allocation3] sm:$0xff] %v1109
    %1118 = vst [vmem:[#allocation3 + $0x8] sm:$0xff] %v1114
    %v1119 = vld [vmem:[#allocation13] sm:$0xff]
    %v1120 = vld [vmem:[#allocation13 + $0x8] sm:$0xff]
    %v1121 = vld [vmem:[#allocation13 + $0x10] sm:$0xff]
    %v1122 = vld [vmem:[#allocation13 + $0x18] sm:$0xff]
    %v1123 = vld [vmem:[%s6] sm:$0x1]
    %v1124 = vld [vmem:[#allocation3] sm:$0x3]
    %v1126 = vlaneseq
    %v1127 = vshrl.u32 %v1126, 7
    %v1128 = vsub.s32 0, %v1127
    %v1129 = vrot.slane %v1123, %v1128
    %v1131 = vadd.f32 %v1124, %v1129
    %1132 = vmatprep.subr.mxu0 0.0
    %1133 = vmatpush1.msra.mxu0 0.0
    %1134 = vmatprep.subr.mxu0 0.0
    %1135 = vmatpush1.msra.mxu0 0.0
    %1136 = vmatprep.subr.mxu0 0.0
    %1137 = vmatpush1.msra.mxu0 0.0
    %1138 = vmatprep.subr.mxu0 0.0
    %1139 = vmatpush1.msra.mxu0 0.0
    %1140 = vmatprep.subr.mxu0 0.0
    %1141 = vmatpush1.msra.mxu0 0.0
    %1142 = vmatprep.subr.mxu0 0.0
    %1143 = vmatpush1.msra.mxu0 0.0
    %1144 = vmatprep.subr.mxu0 0.0
    %1145 = vmatpush1.msra.mxu0 0.0
    %1146 = vmatprep.subr.mxu0 0.0
    %1147 = vmatpush1.msra.mxu0 0.0
    %1148 = vmatprep.subr.mxu0 0.0
    %1149 = vmatpush1.msra.mxu0 0.0
    %1150 = vmatprep.subr.mxu0 0.0
    %1151 = vmatpush1.msra.mxu0 0.0
    %1152 = vmatprep.subr.mxu0 0.0
    %1153 = vmatpush1.msra.mxu0 0.0
    %1154 = vmatprep.subr.mxu0 0.0
    %1155 = vmatpush1.msra.mxu0 0.0
    %1156 = vmatprep.subr.mxu0 0.0
    %1157 = vmatpush1.msra.mxu0 %v1122
    %1158 = vmatprep.subr.mxu0 0.0
    %1159 = vmatpush1.msra.mxu0 %v1121
    %1160 = vmatprep.subr.mxu0 0.0
    %1161 = vmatpush1.msra.mxu0 %v1120
    %1162 = vmatprep.subr.mxu0 0.0
    %1163 = vmatpush1.msra.mxu0 %v1119
    %1164 = vmatprep.subr.mxu0 0.0
    %1165 = vmatpush2.msra.mxu0 0.0
    %1166 = vmatprep.subr.mxu0 0.0
    %1167 = vmatpush2.msra.mxu0 0.0
    %1168 = vmatprep.subr.mxu0 0.0
    %1169 = vmatpush2.msra.mxu0 0.0
    %1170 = vmatprep.subr.mxu0 0.0
    %1171 = vmatpush2.msra.mxu0 0.0
    %1172 = vmatprep.subr.mxu0 0.0
    %1173 = vmatpush2.msra.mxu0 0.0
    %1174 = vmatprep.subr.mxu0 0.0
    %1175 = vmatpush2.msra.mxu0 0.0
    %1176 = vmatprep.subr.mxu0 0.0
    %1177 = vmatpush2.msra.mxu0 0.0
    %1178 = vmatprep.subr.mxu0 0.0
    %1179 = vmatpush2.msra.mxu0 0.0
    %1180 = vmatprep.subr.mxu0 0.0
    %1181 = vmatpush2.msra.mxu0 0.0
    %1182 = vmatprep.subr.mxu0 0.0
    %1183 = vmatpush2.msra.mxu0 0.0
    %1184 = vmatprep.subr.mxu0 0.0
    %1185 = vmatpush2.msra.mxu0 0.0
    %1186 = vmatprep.subr.mxu0 0.0
    %1187 = vmatpush2.msra.mxu0 0.0
    %1188 = vmatprep.subr.mxu0 0.0
    %1189 = vmatpush2.msra.mxu0 0.0
    %1190 = vmatprep.subr.mxu0 0.0
    %1191 = vmatpush2.msra.mxu0 0.0
    %1192 = vmatprep.subr.mxu0 0.0
    %1193 = vmatpush2.msra.mxu0 0.0
    %1194 = vmatprep.subr.mxu0 0.0
    %1195 = vmatpush2.msra.mxu0 0.0
    %1196 = vmatprep.mubr.f32.mxu0 0.0
    %1197 = vmatmul.mubr.f32.gmra.mxu0 %v199
    %v1198 = vpop.f32.mrf.mxu0
    %v1199 = vadd.f32 0.0, %v1198
    %v1200 = vpop.f32.mrf.mxu0
    %1201 = vdwg.mxu0
    %v1202 = vadd.f32 %v1131, %v1199
    %v1203 = vxor.u32 %v1202, 2147483648
    %v1204 = vmul.f32 %v1203, 1.442695
    %v1205 = vpow.pop %v1204
    %v1206 = vadd.f32 %v1205, 1.0
    %v1207 = vrcp.pop %v1206
    %v1208 = vmul.f32 1.0, %v1207
    %v1209 = vtanh.pop %v1202
    %v1210 = vmul.f32 %v1208, 0.0
    %1212 = vrot.lane.b32.xlu0 %v1209, 64
    %v1213 = vpop.permute.xlu0 %1212
    %v1215 = vmul.f32 %v1208, %v1213
    %1217 = vrot.lane.b32.xlu0 %v1215, 32
    %v1218 = vpop.permute.xlu0 %1217
    %v1220 = vadd.f32 %v1210, %v1218
    %v1221 = vtanh.pop %v1220
    %1223 = vrot.lane.b32.xlu0 %v1221, 64
    %v1224 = vpop.permute.xlu0 %1223
    %v1226 = vmul.f32 %v1208, %v1224
    %1228 = vrot.lane.b32.xlu0 %v1226, 32
    %v1229 = vpop.permute.xlu0 %1228
    %1231 = vst.msk [vmem:[#allocation14] sm:$0x3] %vm300, %v1229
    %v1232 = vld [vmem:[#allocation3 + $0x2] sm:$0x3]
    %v1233 = vadd.f32 %v1232, %v1129
    %v1234 = vsel %vm101, %v1229, 0
    %1236 = vmatprep.subr.mxu0 0.0
    %1237 = vmatpush1.msra.mxu0 0.0
    %1238 = vmatprep.subr.mxu0 0.0
    %1239 = vmatpush1.msra.mxu0 0.0
    %1240 = vmatprep.subr.mxu0 0.0
    %1241 = vmatpush1.msra.mxu0 0.0
    %1242 = vmatprep.subr.mxu0 0.0
    %1243 = vmatpush1.msra.mxu0 0.0
    %1244 = vmatprep.subr.mxu0 0.0
    %1245 = vmatpush1.msra.mxu0 0.0
    %1246 = vmatprep.subr.mxu0 0.0
    %1247 = vmatpush1.msra.mxu0 0.0
    %1248 = vmatprep.subr.mxu0 0.0
    %1249 = vmatpush1.msra.mxu0 0.0
    %1250 = vmatprep.subr.mxu0 0.0
    %1251 = vmatpush1.msra.mxu0 0.0
    %1252 = vmatprep.subr.mxu0 0.0
    %1253 = vmatpush1.msra.mxu0 0.0
    %1254 = vmatprep.subr.mxu0 0.0
    %1255 = vmatpush1.msra.mxu0 0.0
    %1256 = vmatprep.subr.mxu0 0.0
    %1257 = vmatpush1.msra.mxu0 0.0
    %1258 = vmatprep.subr.mxu0 0.0
    %1259 = vmatpush1.msra.mxu0 0.0
    %1260 = vmatprep.subr.mxu0 0.0
    %1261 = vmatpush1.msra.mxu0 %v1122
    %1262 = vmatprep.subr.mxu0 0.0
    %1263 = vmatpush1.msra.mxu0 %v1121
    %1264 = vmatprep.subr.mxu0 0.0
    %1265 = vmatpush1.msra.mxu0 %v1120
    %1266 = vmatprep.subr.mxu0 0.0
    %1267 = vmatpush1.msra.mxu0 %v1119
    %1268 = vmatprep.subr.mxu0 0.0
    %1269 = vmatpush2.msra.mxu0 0.0
    %1270 = vmatprep.subr.mxu0 0.0
    %1271 = vmatpush2.msra.mxu0 0.0
    %1272 = vmatprep.subr.mxu0 0.0
    %1273 = vmatpush2.msra.mxu0 0.0
    %1274 = vmatprep.subr.mxu0 0.0
    %1275 = vmatpush2.msra.mxu0 0.0
    %1276 = vmatprep.subr.mxu0 0.0
    %1277 = vmatpush2.msra.mxu0 0.0
    %1278 = vmatprep.subr.mxu0 0.0
    %1279 = vmatpush2.msra.mxu0 0.0
    %1280 = vmatprep.subr.mxu0 0.0
    %1281 = vmatpush2.msra.mxu0 0.0
    %1282 = vmatprep.subr.mxu0 0.0
    %1283 = vmatpush2.msra.mxu0 0.0
    %1284 = vmatprep.subr.mxu0 0.0
    %1285 = vmatpush2.msra.mxu0 0.0
    %1286 = vmatprep.subr.mxu0 0.0
    %1287 = vmatpush2.msra.mxu0 0.0
    %1288 = vmatprep.subr.mxu0 0.0
    %1289 = vmatpush2.msra.mxu0 0.0
    %1290 = vmatprep.subr.mxu0 0.0
    %1291 = vmatpush2.msra.mxu0 0.0
    %1292 = vmatprep.subr.mxu0 0.0
    %1293 = vmatpush2.msra.mxu0 0.0
    %1294 = vmatprep.subr.mxu0 0.0
    %1295 = vmatpush2.msra.mxu0 0.0
    %1296 = vmatprep.subr.mxu0 0.0
    %1297 = vmatpush2.msra.mxu0 0.0
    %1298 = vmatprep.subr.mxu0 0.0
    %1299 = vmatpush2.msra.mxu0 0.0
    %1300 = vmatprep.mubr.f32.mxu0 0.0
    %1301 = vmatmul.mubr.f32.gmra.mxu0 %v1234
    %v1302 = vpop.f32.mrf.mxu0
    %v1303 = vadd.f32 0.0, %v1302
    %v1304 = vpop.f32.mrf.mxu0
    %1305 = vdwg.mxu0
    %v1306 = vadd.f32 %v1233, %v1303
    %v1307 = vxor.u32 %v1306, 2147483648
    %v1308 = vmul.f32 %v1307, 1.442695
    %v1309 = vpow.pop %v1308
    %v1310 = vadd.f32 %v1309, 1.0
    %v1311 = vrcp.pop %v1310
    %v1312 = vmul.f32 1.0, %v1311
    %v1313 = vtanh.pop %v1306
    %v1314 = vmul.f32 %v1312, %v1220
    %1316 = vrot.lane.b32.xlu0 %v1313, 64
    %v1317 = vpop.permute.xlu0 %1316
    %v1319 = vmul.f32 %v1312, %v1317
    %1321 = vrot.lane.b32.xlu0 %v1319, 32
    %v1322 = vpop.permute.xlu0 %1321
    %v1324 = vadd.f32 %v1314, %v1322
    %v1325 = vtanh.pop %v1324
    %1327 = vrot.lane.b32.xlu0 %v1325, 64
    %v1328 = vpop.permute.xlu0 %1327
    %v1330 = vmul.f32 %v1312, %v1328
    %1332 = vrot.lane.b32.xlu0 %v1330, 32
    %v1333 = vpop.permute.xlu0 %1332
    %1335 = vst.msk [vmem:[#allocation14 + $0x2] sm:$0x3] %vm300, %v1333
    %v1336 = vld [vmem:[#allocation3 + $0x4] sm:$0x3]
    %v1337 = vadd.f32 %v1336, %v1129
    %v1338 = vsel %vm101, %v1333, 0
    %1340 = vmatprep.subr.mxu0 0.0
    %1341 = vmatpush1.msra.mxu0 0.0
    %1342 = vmatprep.subr.mxu0 0.0
    %1343 = vmatpush1.msra.mxu0 0.0
    %1344 = vmatprep.subr.mxu0 0.0
    %1345 = vmatpush1.msra.mxu0 0.0
    %1346 = vmatprep.subr.mxu0 0.0
    %1347 = vmatpush1.msra.mxu0 0.0
    %1348 = vmatprep.subr.mxu0 0.0
    %1349 = vmatpush1.msra.mxu0 0.0
    %1350 = vmatprep.subr.mxu0 0.0
    %1351 = vmatpush1.msra.mxu0 0.0
    %1352 = vmatprep.subr.mxu0 0.0
    %1353 = vmatpush1.msra.mxu0 0.0
    %1354 = vmatprep.subr.mxu0 0.0
    %1355 = vmatpush1.msra.mxu0 0.0
    %1356 = vmatprep.subr.mxu0 0.0
    %1357 = vmatpush1.msra.mxu0 0.0
    %1358 = vmatprep.subr.mxu0 0.0
    %1359 = vmatpush1.msra.mxu0 0.0
    %1360 = vmatprep.subr.mxu0 0.0
    %1361 = vmatpush1.msra.mxu0 0.0
    %1362 = vmatprep.subr.mxu0 0.0
    %1363 = vmatpush1.msra.mxu0 0.0
    %1364 = vmatprep.subr.mxu0 0.0
    %1365 = vmatpush1.msra.mxu0 %v1122
    %1366 = vmatprep.subr.mxu0 0.0
    %1367 = vmatpush1.msra.mxu0 %v1121
    %1368 = vmatprep.subr.mxu0 0.0
    %1369 = vmatpush1.msra.mxu0 %v1120
    %1370 = vmatprep.subr.mxu0 0.0
    %1371 = vmatpush1.msra.mxu0 %v1119
    %1372 = vmatprep.subr.mxu0 0.0
    %1373 = vmatpush2.msra.mxu0 0.0
    %1374 = vmatprep.subr.mxu0 0.0
    %1375 = vmatpush2.msra.mxu0 0.0
    %1376 = vmatprep.subr.mxu0 0.0
    %1377 = vmatpush2.msra.mxu0 0.0
    %1378 = vmatprep.subr.mxu0 0.0
    %1379 = vmatpush2.msra.mxu0 0.0
    %1380 = vmatprep.subr.mxu0 0.0
    %1381 = vmatpush2.msra.mxu0 0.0
    %1382 = vmatprep.subr.mxu0 0.0
    %1383 = vmatpush2.msra.mxu0 0.0
    %1384 = vmatprep.subr.mxu0 0.0
    %1385 = vmatpush2.msra.mxu0 0.0
    %1386 = vmatprep.subr.mxu0 0.0
    %1387 = vmatpush2.msra.mxu0 0.0
    %1388 = vmatprep.subr.mxu0 0.0
    %1389 = vmatpush2.msra.mxu0 0.0
    %1390 = vmatprep.subr.mxu0 0.0
    %1391 = vmatpush2.msra.mxu0 0.0
    %1392 = vmatprep.subr.mxu0 0.0
    %1393 = vmatpush2.msra.mxu0 0.0
    %1394 = vmatprep.subr.mxu0 0.0
    %1395 = vmatpush2.msra.mxu0 0.0
    %1396 = vmatprep.subr.mxu0 0.0
    %1397 = vmatpush2.msra.mxu0 0.0
    %1398 = vmatprep.subr.mxu0 0.0
    %1399 = vmatpush2.msra.mxu0 0.0
    %1400 = vmatprep.subr.mxu0 0.0
    %1401 = vmatpush2.msra.mxu0 0.0
    %1402 = vmatprep.subr.mxu0 0.0
    %1403 = vmatpush2.msra.mxu0 0.0
    %1404 = vmatprep.mubr.f32.mxu0 0.0
    %1405 = vmatmul.mubr.f32.gmra.mxu0 %v1338
    %v1406 = vpop.f32.mrf.mxu0
    %v1407 = vadd.f32 0.0, %v1406
    %v1408 = vpop.f32.mrf.mxu0
    %1409 = vdwg.mxu0
    %v1410 = vadd.f32 %v1337, %v1407
    %v1411 = vxor.u32 %v1410, 2147483648
    %v1412 = vmul.f32 %v1411, 1.442695
    %v1413 = vpow.pop %v1412
    %v1414 = vadd.f32 %v1413, 1.0
    %v1415 = vrcp.pop %v1414
    %v1416 = vmul.f32 1.0, %v1415
    %v1417 = vtanh.pop %v1410
    %v1418 = vmul.f32 %v1416, %v1324
    %1420 = vrot.lane.b32.xlu0 %v1417, 64
    %v1421 = vpop.permute.xlu0 %1420
    %v1423 = vmul.f32 %v1416, %v1421
    %1425 = vrot.lane.b32.xlu0 %v1423, 32
    %v1426 = vpop.permute.xlu0 %1425
    %v1428 = vadd.f32 %v1418, %v1426
    %v1429 = vtanh.pop %v1428
    %1431 = vrot.lane.b32.xlu0 %v1429, 64
    %v1432 = vpop.permute.xlu0 %1431
    %v1434 = vmul.f32 %v1416, %v1432
    %1436 = vrot.lane.b32.xlu0 %v1434, 32
    %v1437 = vpop.permute.xlu0 %1436
    %1439 = vst.msk [vmem:[#allocation14 + $0x4] sm:$0x3] %vm300, %v1437
    %v1440 = vld [vmem:[#allocation3 + $0x6] sm:$0x3]
    %v1441 = vadd.f32 %v1440, %v1129
    %v1442 = vsel %vm101, %v1437, 0
    %1444 = vmatprep.subr.mxu0 0.0
    %1445 = vmatpush1.msra.mxu0 0.0
    %1446 = vmatprep.subr.mxu0 0.0
    %1447 = vmatpush1.msra.mxu0 0.0
    %1448 = vmatprep.subr.mxu0 0.0
    %1449 = vmatpush1.msra.mxu0 0.0
    %1450 = vmatprep.subr.mxu0 0.0
    %1451 = vmatpush1.msra.mxu0 0.0
    %1452 = vmatprep.subr.mxu0 0.0
    %1453 = vmatpush1.msra.mxu0 0.0
    %1454 = vmatprep.subr.mxu0 0.0
    %1455 = vmatpush1.msra.mxu0 0.0
    %1456 = vmatprep.subr.mxu0 0.0
    %1457 = vmatpush1.msra.mxu0 0.0
    %1458 = vmatprep.subr.mxu0 0.0
    %1459 = vmatpush1.msra.mxu0 0.0
    %1460 = vmatprep.subr.mxu0 0.0
    %1461 = vmatpush1.msra.mxu0 0.0
    %1462 = vmatprep.subr.mxu0 0.0
    %1463 = vmatpush1.msra.mxu0 0.0
    %1464 = vmatprep.subr.mxu0 0.0
    %1465 = vmatpush1.msra.mxu0 0.0
    %1466 = vmatprep.subr.mxu0 0.0
    %1467 = vmatpush1.msra.mxu0 0.0
    %1468 = vmatprep.subr.mxu0 0.0
    %1469 = vmatpush1.msra.mxu0 %v1122
    %1470 = vmatprep.subr.mxu0 0.0
    %1471 = vmatpush1.msra.mxu0 %v1121
    %1472 = vmatprep.subr.mxu0 0.0
    %1473 = vmatpush1.msra.mxu0 %v1120
    %1474 = vmatprep.subr.mxu0 0.0
    %1475 = vmatpush1.msra.mxu0 %v1119
    %1476 = vmatprep.subr.mxu0 0.0
    %1477 = vmatpush2.msra.mxu0 0.0
    %1478 = vmatprep.subr.mxu0 0.0
    %1479 = vmatpush2.msra.mxu0 0.0
    %1480 = vmatprep.subr.mxu0 0.0
    %1481 = vmatpush2.msra.mxu0 0.0
    %1482 = vmatprep.subr.mxu0 0.0
    %1483 = vmatpush2.msra.mxu0 0.0
    %1484 = vmatprep.subr.mxu0 0.0
    %1485 = vmatpush2.msra.mxu0 0.0
    %1486 = vmatprep.subr.mxu0 0.0
    %1487 = vmatpush2.msra.mxu0 0.0
    %1488 = vmatprep.subr.mxu0 0.0
    %1489 = vmatpush2.msra.mxu0 0.0
    %1490 = vmatprep.subr.mxu0 0.0
    %1491 = vmatpush2.msra.mxu0 0.0
    %1492 = vmatprep.subr.mxu0 0.0
    %1493 = vmatpush2.msra.mxu0 0.0
    %1494 = vmatprep.subr.mxu0 0.0
    %1495 = vmatpush2.msra.mxu0 0.0
    %1496 = vmatprep.subr.mxu0 0.0
    %1497 = vmatpush2.msra.mxu0 0.0
    %1498 = vmatprep.subr.mxu0 0.0
    %1499 = vmatpush2.msra.mxu0 0.0
    %1500 = vmatprep.subr.mxu0 0.0
    %1501 = vmatpush2.msra.mxu0 0.0
    %1502 = vmatprep.subr.mxu0 0.0
    %1503 = vmatpush2.msra.mxu0 0.0
    %1504 = vmatprep.subr.mxu0 0.0
    %1505 = vmatpush2.msra.mxu0 0.0
    %1506 = vmatprep.subr.mxu0 0.0
    %1507 = vmatpush2.msra.mxu0 0.0
    %1508 = vmatprep.mubr.f32.mxu0 0.0
    %1509 = vmatmul.mubr.f32.gmra.mxu0 %v1442
    %v1510 = vpop.f32.mrf.mxu0
    %v1511 = vadd.f32 0.0, %v1510
    %v1512 = vpop.f32.mrf.mxu0
    %1513 = vdwg.mxu0
    %v1514 = vadd.f32 %v1441, %v1511
    %v1515 = vxor.u32 %v1514, 2147483648
    %v1516 = vmul.f32 %v1515, 1.442695
    %v1517 = vpow.pop %v1516
    %v1518 = vadd.f32 %v1517, 1.0
    %v1519 = vrcp.pop %v1518
    %v1520 = vmul.f32 1.0, %v1519
    %v1521 = vtanh.pop %v1514
    %v1522 = vmul.f32 %v1520, %v1428
    %1524 = vrot.lane.b32.xlu0 %v1521, 64
    %v1525 = vpop.permute.xlu0 %1524
    %v1527 = vmul.f32 %v1520, %v1525
    %1529 = vrot.lane.b32.xlu0 %v1527, 32
    %v1530 = vpop.permute.xlu0 %1529
    %v1532 = vadd.f32 %v1522, %v1530
    %v1533 = vtanh.pop %v1532
    %1535 = vrot.lane.b32.xlu0 %v1533, 64
    %v1536 = vpop.permute.xlu0 %1535
    %v1538 = vmul.f32 %v1520, %v1536
    %1540 = vrot.lane.b32.xlu0 %v1538, 32
    %v1541 = vpop.permute.xlu0 %1540
    %1543 = vst.msk [vmem:[#allocation14 + $0x6] sm:$0x3] %vm300, %v1541
    %v1544 = vld [vmem:[#allocation3 + $0x8] sm:$0x3]
    %v1545 = vadd.f32 %v1544, %v1129
    %v1546 = vsel %vm101, %v1541, 0
    %1548 = vmatprep.subr.mxu0 0.0
    %1549 = vmatpush1.msra.mxu0 0.0
    %1550 = vmatprep.subr.mxu0 0.0
    %1551 = vmatpush1.msra.mxu0 0.0
    %1552 = vmatprep.subr.mxu0 0.0
    %1553 = vmatpush1.msra.mxu0 0.0
    %1554 = vmatprep.subr.mxu0 0.0
    %1555 = vmatpush1.msra.mxu0 0.0
    %1556 = vmatprep.subr.mxu0 0.0
    %1557 = vmatpush1.msra.mxu0 0.0
    %1558 = vmatprep.subr.mxu0 0.0
    %1559 = vmatpush1.msra.mxu0 0.0
    %1560 = vmatprep.subr.mxu0 0.0
    %1561 = vmatpush1.msra.mxu0 0.0
    %1562 = vmatprep.subr.mxu0 0.0
    %1563 = vmatpush1.msra.mxu0 0.0
    %1564 = vmatprep.subr.mxu0 0.0
    %1565 = vmatpush1.msra.mxu0 0.0
    %1566 = vmatprep.subr.mxu0 0.0
    %1567 = vmatpush1.msra.mxu0 0.0
    %1568 = vmatprep.subr.mxu0 0.0
    %1569 = vmatpush1.msra.mxu0 0.0
    %1570 = vmatprep.subr.mxu0 0.0
    %1571 = vmatpush1.msra.mxu0 0.0
    %1572 = vmatprep.subr.mxu0 0.0
    %1573 = vmatpush1.msra.mxu0 %v1122
    %1574 = vmatprep.subr.mxu0 0.0
    %1575 = vmatpush1.msra.mxu0 %v1121
    %1576 = vmatprep.subr.mxu0 0.0
    %1577 = vmatpush1.msra.mxu0 %v1120
    %1578 = vmatprep.subr.mxu0 0.0
    %1579 = vmatpush1.msra.mxu0 %v1119
    %1580 = vmatprep.subr.mxu0 0.0
    %1581 = vmatpush2.msra.mxu0 0.0
    %1582 = vmatprep.subr.mxu0 0.0
    %1583 = vmatpush2.msra.mxu0 0.0
    %1584 = vmatprep.subr.mxu0 0.0
    %1585 = vmatpush2.msra.mxu0 0.0
    %1586 = vmatprep.subr.mxu0 0.0
    %1587 = vmatpush2.msra.mxu0 0.0
    %1588 = vmatprep.subr.mxu0 0.0
    %1589 = vmatpush2.msra.mxu0 0.0
    %1590 = vmatprep.subr.mxu0 0.0
    %1591 = vmatpush2.msra.mxu0 0.0
    %1592 = vmatprep.subr.mxu0 0.0
    %1593 = vmatpush2.msra.mxu0 0.0
    %1594 = vmatprep.subr.mxu0 0.0
    %1595 = vmatpush2.msra.mxu0 0.0
    %1596 = vmatprep.subr.mxu0 0.0
    %1597 = vmatpush2.msra.mxu0 0.0
    %1598 = vmatprep.subr.mxu0 0.0
    %1599 = vmatpush2.msra.mxu0 0.0
    %1600 = vmatprep.subr.mxu0 0.0
    %1601 = vmatpush2.msra.mxu0 0.0
    %1602 = vmatprep.subr.mxu0 0.0
    %1603 = vmatpush2.msra.mxu0 0.0
    %1604 = vmatprep.subr.mxu0 0.0
    %1605 = vmatpush2.msra.mxu0 0.0
    %1606 = vmatprep.subr.mxu0 0.0
    %1607 = vmatpush2.msra.mxu0 0.0
    %1608 = vmatprep.subr.mxu0 0.0
    %1609 = vmatpush2.msra.mxu0 0.0
    %1610 = vmatprep.subr.mxu0 0.0
    %1611 = vmatpush2.msra.mxu0 0.0
    %1612 = vmatprep.mubr.f32.mxu0 0.0
    %1613 = vmatmul.mubr.f32.gmra.mxu0 %v1546
    %v1614 = vpop.f32.mrf.mxu0
    %v1615 = vadd.f32 0.0, %v1614
    %v1616 = vpop.f32.mrf.mxu0
    %1617 = vdwg.mxu0
    %v1618 = vadd.f32 %v1545, %v1615
    %v1619 = vxor.u32 %v1618, 2147483648
    %v1620 = vmul.f32 %v1619, 1.442695
    %v1621 = vpow.pop %v1620
    %v1622 = vadd.f32 %v1621, 1.0
    %v1623 = vrcp.pop %v1622
    %v1624 = vmul.f32 1.0, %v1623
    %v1625 = vtanh.pop %v1618
    %v1626 = vmul.f32 %v1624, %v1532
    %1628 = vrot.lane.b32.xlu0 %v1625, 64
    %v1629 = vpop.permute.xlu0 %1628
    %v1631 = vmul.f32 %v1624, %v1629
    %1633 = vrot.lane.b32.xlu0 %v1631, 32
    %v1634 = vpop.permute.xlu0 %1633
    %v1636 = vadd.f32 %v1626, %v1634
    %v1637 = vtanh.pop %v1636
    %1639 = vrot.lane.b32.xlu0 %v1637, 64
    %v1640 = vpop.permute.xlu0 %1639
    %v1642 = vmul.f32 %v1624, %v1640
    %1644 = vrot.lane.b32.xlu0 %v1642, 32
    %v1645 = vpop.permute.xlu0 %1644
    %1647 = vst.msk [vmem:[#allocation14 + $0x8] sm:$0x3] %vm300, %v1645
    %v1648 = vld [vmem:[#allocation3 + $0xa] sm:$0x3]
    %v1649 = vadd.f32 %v1648, %v1129
    %v1650 = vsel %vm101, %v1645, 0
    %1652 = vmatprep.subr.mxu0 0.0
    %1653 = vmatpush1.msra.mxu0 0.0
    %1654 = vmatprep.subr.mxu0 0.0
    %1655 = vmatpush1.msra.mxu0 0.0
    %1656 = vmatprep.subr.mxu0 0.0
    %1657 = vmatpush1.msra.mxu0 0.0
    %1658 = vmatprep.subr.mxu0 0.0
    %1659 = vmatpush1.msra.mxu0 0.0
    %1660 = vmatprep.subr.mxu0 0.0
    %1661 = vmatpush1.msra.mxu0 0.0
    %1662 = vmatprep.subr.mxu0 0.0
    %1663 = vmatpush1.msra.mxu0 0.0
    %1664 = vmatprep.subr.mxu0 0.0
    %1665 = vmatpush1.msra.mxu0 0.0
    %1666 = vmatprep.subr.mxu0 0.0
    %1667 = vmatpush1.msra.mxu0 0.0
    %1668 = vmatprep.subr.mxu0 0.0
    %1669 = vmatpush1.msra.mxu0 0.0
    %1670 = vmatprep.subr.mxu0 0.0
    %1671 = vmatpush1.msra.mxu0 0.0
    %1672 = vmatprep.subr.mxu0 0.0
    %1673 = vmatpush1.msra.mxu0 0.0
    %1674 = vmatprep.subr.mxu0 0.0
    %1675 = vmatpush1.msra.mxu0 0.0
    %1676 = vmatprep.subr.mxu0 0.0
    %1677 = vmatpush1.msra.mxu0 %v1122
    %1678 = vmatprep.subr.mxu0 0.0
    %1679 = vmatpush1.msra.mxu0 %v1121
    %1680 = vmatprep.subr.mxu0 0.0
    %1681 = vmatpush1.msra.mxu0 %v1120
    %1682 = vmatprep.subr.mxu0 0.0
    %1683 = vmatpush1.msra.mxu0 %v1119
    %1684 = vmatprep.subr.mxu0 0.0
    %1685 = vmatpush2.msra.mxu0 0.0
    %1686 = vmatprep.subr.mxu0 0.0
    %1687 = vmatpush2.msra.mxu0 0.0
    %1688 = vmatprep.subr.mxu0 0.0
    %1689 = vmatpush2.msra.mxu0 0.0
    %1690 = vmatprep.subr.mxu0 0.0
    %1691 = vmatpush2.msra.mxu0 0.0
    %1692 = vmatprep.subr.mxu0 0.0
    %1693 = vmatpush2.msra.mxu0 0.0
    %1694 = vmatprep.subr.mxu0 0.0
    %1695 = vmatpush2.msra.mxu0 0.0
    %1696 = vmatprep.subr.mxu0 0.0
    %1697 = vmatpush2.msra.mxu0 0.0
    %1698 = vmatprep.subr.mxu0 0.0
    %1699 = vmatpush2.msra.mxu0 0.0
    %1700 = vmatprep.subr.mxu0 0.0
    %1701 = vmatpush2.msra.mxu0 0.0
    %1702 = vmatprep.subr.mxu0 0.0
    %1703 = vmatpush2.msra.mxu0 0.0
    %1704 = vmatprep.subr.mxu0 0.0
    %1705 = vmatpush2.msra.mxu0 0.0
    %1706 = vmatprep.subr.mxu0 0.0
    %1707 = vmatpush2.msra.mxu0 0.0
    %1708 = vmatprep.subr.mxu0 0.0
    %1709 = vmatpush2.msra.mxu0 0.0
    %1710 = vmatprep.subr.mxu0 0.0
    %1711 = vmatpush2.msra.mxu0 0.0
    %1712 = vmatprep.subr.mxu0 0.0
    %1713 = vmatpush2.msra.mxu0 0.0
    %1714 = vmatprep.subr.mxu0 0.0
    %1715 = vmatpush2.msra.mxu0 0.0
    %1716 = vmatprep.mubr.f32.mxu0 0.0
    %1717 = vmatmul.mubr.f32.gmra.mxu0 %v1650
    %v1718 = vpop.f32.mrf.mxu0
    %v1719 = vadd.f32 0.0, %v1718
    %v1720 = vpop.f32.mrf.mxu0
    %1721 = vdwg.mxu0
    %v1722 = vadd.f32 %v1649, %v1719
    %v1723 = vxor.u32 %v1722, 2147483648
    %v1724 = vmul.f32 %v1723, 1.442695
    %v1725 = vpow.pop %v1724
    %v1726 = vadd.f32 %v1725, 1.0
    %v1727 = vrcp.pop %v1726
    %v1728 = vmul.f32 1.0, %v1727
    %v1729 = vtanh.pop %v1722
    %v1730 = vmul.f32 %v1728, %v1636
    %1732 = vrot.lane.b32.xlu0 %v1729, 64
    %v1733 = vpop.permute.xlu0 %1732
    %v1735 = vmul.f32 %v1728, %v1733
    %1737 = vrot.lane.b32.xlu0 %v1735, 32
    %v1738 = vpop.permute.xlu0 %1737
    %v1740 = vadd.f32 %v1730, %v1738
    %v1741 = vtanh.pop %v1740
    %1743 = vrot.lane.b32.xlu0 %v1741, 64
    %v1744 = vpop.permute.xlu0 %1743
    %v1746 = vmul.f32 %v1728, %v1744
    %1748 = vrot.lane.b32.xlu0 %v1746, 32
    %v1749 = vpop.permute.xlu0 %1748
    %1751 = vst.msk [vmem:[#allocation14 + $0xa] sm:$0x3] %vm300, %v1749
    %v1752 = vld [vmem:[#allocation3 + $0xc] sm:$0x3]
    %v1753 = vadd.f32 %v1752, %v1129
    %v1754 = vsel %vm101, %v1749, 0
    %1756 = vmatprep.subr.mxu0 0.0
    %1757 = vmatpush1.msra.mxu0 0.0
    %1758 = vmatprep.subr.mxu0 0.0
    %1759 = vmatpush1.msra.mxu0 0.0
    %1760 = vmatprep.subr.mxu0 0.0
    %1761 = vmatpush1.msra.mxu0 0.0
    %1762 = vmatprep.subr.mxu0 0.0
    %1763 = vmatpush1.msra.mxu0 0.0
    %1764 = vmatprep.subr.mxu0 0.0
    %1765 = vmatpush1.msra.mxu0 0.0
    %1766 = vmatprep.subr.mxu0 0.0
    %1767 = vmatpush1.msra.mxu0 0.0
    %1768 = vmatprep.subr.mxu0 0.0
    %1769 = vmatpush1.msra.mxu0 0.0
    %1770 = vmatprep.subr.mxu0 0.0
    %1771 = vmatpush1.msra.mxu0 0.0
    %1772 = vmatprep.subr.mxu0 0.0
    %1773 = vmatpush1.msra.mxu0 0.0
    %1774 = vmatprep.subr.mxu0 0.0
    %1775 = vmatpush1.msra.mxu0 0.0
    %1776 = vmatprep.subr.mxu0 0.0
    %1777 = vmatpush1.msra.mxu0 0.0
    %1778 = vmatprep.subr.mxu0 0.0
    %1779 = vmatpush1.msra.mxu0 0.0
    %1780 = vmatprep.subr.mxu0 0.0
    %1781 = vmatpush1.msra.mxu0 %v1122
    %1782 = vmatprep.subr.mxu0 0.0
    %1783 = vmatpush1.msra.mxu0 %v1121
    %1784 = vmatprep.subr.mxu0 0.0
    %1785 = vmatpush1.msra.mxu0 %v1120
    %1786 = vmatprep.subr.mxu0 0.0
    %1787 = vmatpush1.msra.mxu0 %v1119
    %1788 = vmatprep.subr.mxu0 0.0
    %1789 = vmatpush2.msra.mxu0 0.0
    %1790 = vmatprep.subr.mxu0 0.0
    %1791 = vmatpush2.msra.mxu0 0.0
    %1792 = vmatprep.subr.mxu0 0.0
    %1793 = vmatpush2.msra.mxu0 0.0
    %1794 = vmatprep.subr.mxu0 0.0
    %1795 = vmatpush2.msra.mxu0 0.0
    %1796 = vmatprep.subr.mxu0 0.0
    %1797 = vmatpush2.msra.mxu0 0.0
    %1798 = vmatprep.subr.mxu0 0.0
    %1799 = vmatpush2.msra.mxu0 0.0
    %1800 = vmatprep.subr.mxu0 0.0
    %1801 = vmatpush2.msra.mxu0 0.0
    %1802 = vmatprep.subr.mxu0 0.0
    %1803 = vmatpush2.msra.mxu0 0.0
    %1804 = vmatprep.subr.mxu0 0.0
    %1805 = vmatpush2.msra.mxu0 0.0
    %1806 = vmatprep.subr.mxu0 0.0
    %1807 = vmatpush2.msra.mxu0 0.0
    %1808 = vmatprep.subr.mxu0 0.0
    %1809 = vmatpush2.msra.mxu0 0.0
    %1810 = vmatprep.subr.mxu0 0.0
    %1811 = vmatpush2.msra.mxu0 0.0
    %1812 = vmatprep.subr.mxu0 0.0
    %1813 = vmatpush2.msra.mxu0 0.0
    %1814 = vmatprep.subr.mxu0 0.0
    %1815 = vmatpush2.msra.mxu0 0.0
    %1816 = vmatprep.subr.mxu0 0.0
    %1817 = vmatpush2.msra.mxu0 0.0
    %1818 = vmatprep.subr.mxu0 0.0
    %1819 = vmatpush2.msra.mxu0 0.0
    %1820 = vmatprep.mubr.f32.mxu0 0.0
    %1821 = vmatmul.mubr.f32.gmra.mxu0 %v1754
    %v1822 = vpop.f32.mrf.mxu0
    %v1823 = vadd.f32 0.0, %v1822
    %v1824 = vpop.f32.mrf.mxu0
    %1825 = vdwg.mxu0
    %v1826 = vadd.f32 %v1753, %v1823
    %v1827 = vxor.u32 %v1826, 2147483648
    %v1828 = vmul.f32 %v1827, 1.442695
    %v1829 = vpow.pop %v1828
    %v1830 = vadd.f32 %v1829, 1.0
    %v1831 = vrcp.pop %v1830
    %v1832 = vmul.f32 1.0, %v1831
    %v1833 = vtanh.pop %v1826
    %v1834 = vmul.f32 %v1832, %v1740
    %1836 = vrot.lane.b32.xlu0 %v1833, 64
    %v1837 = vpop.permute.xlu0 %1836
    %v1839 = vmul.f32 %v1832, %v1837
    %1841 = vrot.lane.b32.xlu0 %v1839, 32
    %v1842 = vpop.permute.xlu0 %1841
    %v1844 = vadd.f32 %v1834, %v1842
    %v1845 = vtanh.pop %v1844
    %1847 = vrot.lane.b32.xlu0 %v1845, 64
    %v1848 = vpop.permute.xlu0 %1847
    %v1850 = vmul.f32 %v1832, %v1848
    %1852 = vrot.lane.b32.xlu0 %v1850, 32
    %v1853 = vpop.permute.xlu0 %1852
    %1855 = vst.msk [vmem:[#allocation14 + $0xc] sm:$0x3] %vm300, %v1853
    %v1856 = vld [vmem:[#allocation3 + $0xe] sm:$0x3]
    %v1857 = vadd.f32 %v1856, %v1129
    %v1858 = vsel %vm101, %v1853, 0
    %1860 = vmatprep.subr.mxu0 0.0
    %1861 = vmatpush1.msra.mxu0 0.0
    %1862 = vmatprep.subr.mxu0 0.0
    %1863 = vmatpush1.msra.mxu0 0.0
    %1864 = vmatprep.subr.mxu0 0.0
    %1865 = vmatpush1.msra.mxu0 0.0
    %1866 = vmatprep.subr.mxu0 0.0
    %1867 = vmatpush1.msra.mxu0 0.0
    %1868 = vmatprep.subr.mxu0 0.0
    %1869 = vmatpush1.msra.mxu0 0.0
    %1870 = vmatprep.subr.mxu0 0.0
    %1871 = vmatpush1.msra.mxu0 0.0
    %1872 = vmatprep.subr.mxu0 0.0
    %1873 = vmatpush1.msra.mxu0 0.0
    %1874 = vmatprep.subr.mxu0 0.0
    %1875 = vmatpush1.msra.mxu0 0.0
    %1876 = vmatprep.subr.mxu0 0.0
    %1877 = vmatpush1.msra.mxu0 0.0
    %1878 = vmatprep.subr.mxu0 0.0
    %1879 = vmatpush1.msra.mxu0 0.0
    %1880 = vmatprep.subr.mxu0 0.0
    %1881 = vmatpush1.msra.mxu0 0.0
    %1882 = vmatprep.subr.mxu0 0.0
    %1883 = vmatpush1.msra.mxu0 0.0
    %1884 = vmatprep.subr.mxu0 0.0
    %1885 = vmatpush1.msra.mxu0 %v1122
    %1886 = vmatprep.subr.mxu0 0.0
    %1887 = vmatpush1.msra.mxu0 %v1121
    %1888 = vmatprep.subr.mxu0 0.0
    %1889 = vmatpush1.msra.mxu0 %v1120
    %1890 = vmatprep.subr.mxu0 0.0
    %1891 = vmatpush1.msra.mxu0 %v1119
    %1892 = vmatprep.subr.mxu0 0.0
    %1893 = vmatpush2.msra.mxu0 0.0
    %1894 = vmatprep.subr.mxu0 0.0
    %1895 = vmatpush2.msra.mxu0 0.0
    %1896 = vmatprep.subr.mxu0 0.0
    %1897 = vmatpush2.msra.mxu0 0.0
    %1898 = vmatprep.subr.mxu0 0.0
    %1899 = vmatpush2.msra.mxu0 0.0
    %1900 = vmatprep.subr.mxu0 0.0
    %1901 = vmatpush2.msra.mxu0 0.0
    %1902 = vmatprep.subr.mxu0 0.0
    %1903 = vmatpush2.msra.mxu0 0.0
    %1904 = vmatprep.subr.mxu0 0.0
    %1905 = vmatpush2.msra.mxu0 0.0
    %1906 = vmatprep.subr.mxu0 0.0
    %1907 = vmatpush2.msra.mxu0 0.0
    %1908 = vmatprep.subr.mxu0 0.0
    %1909 = vmatpush2.msra.mxu0 0.0
    %1910 = vmatprep.subr.mxu0 0.0
    %1911 = vmatpush2.msra.mxu0 0.0
    %1912 = vmatprep.subr.mxu0 0.0
    %1913 = vmatpush2.msra.mxu0 0.0
    %1914 = vmatprep.subr.mxu0 0.0
    %1915 = vmatpush2.msra.mxu0 0.0
    %1916 = vmatprep.subr.mxu0 0.0
    %1917 = vmatpush2.msra.mxu0 0.0
    %1918 = vmatprep.subr.mxu0 0.0
    %1919 = vmatpush2.msra.mxu0 0.0
    %1920 = vmatprep.subr.mxu0 0.0
    %1921 = vmatpush2.msra.mxu0 0.0
    %1922 = vmatprep.subr.mxu0 0.0
    %1923 = vmatpush2.msra.mxu0 0.0
    %1924 = vmatprep.mubr.f32.mxu0 0.0
    %1925 = vmatmul.mubr.f32.gmra.mxu0 %v1858
    %v1926 = vpop.f32.mrf.mxu0
    %v1927 = vadd.f32 0.0, %v1926
    %v1928 = vpop.f32.mrf.mxu0
    %1929 = vdwg.mxu0
    %v1930 = vadd.f32 %v1857, %v1927
    %v1931 = vxor.u32 %v1930, 2147483648
    %v1932 = vmul.f32 %v1931, 1.442695
    %v1933 = vpow.pop %v1932
    %v1934 = vadd.f32 %v1933, 1.0
    %v1935 = vrcp.pop %v1934
    %v1936 = vmul.f32 1.0, %v1935
    %v1937 = vtanh.pop %v1930
    %v1938 = vmul.f32 %v1936, %v1844
    %1940 = vrot.lane.b32.xlu0 %v1937, 64
    %v1941 = vpop.permute.xlu0 %1940
    %v1943 = vmul.f32 %v1936, %v1941
    %1945 = vrot.lane.b32.xlu0 %v1943, 32
    %v1946 = vpop.permute.xlu0 %1945
    %v1948 = vadd.f32 %v1938, %v1946
    %v1949 = vtanh.pop %v1948
    %1951 = vrot.lane.b32.xlu0 %v1949, 64
    %v1952 = vpop.permute.xlu0 %1951
    %v1954 = vmul.f32 %v1936, %v1952
    %1956 = vrot.lane.b32.xlu0 %v1954, 32
    %v1957 = vpop.permute.xlu0 %1956
    %1959 = vst.msk [vmem:[#allocation14 + $0xe] sm:$0x3] %vm300, %v1957
    // Predicated region
    $region50: #{tpu_custom_call.1} parent=1 // pred_check
      _
    $region51: #{tpu_custom_call.1} parent=1 // pred_check_branch
      %1961 = sbr.rel (0) target = $region53
    $region52: #{tpu_custom_call.1} parent=1 // pred_region
      %s1963 = ssub.s32 256, 256
      %1964 = vsyncadd [#allocation7], %s1963
      %s1965 = sshll.u32 [#allocation14], 4
      %s1966 = int_to_ptr.vmem [resolvable:$true] %s1965
      %1971 = dma.vmem_to_hbm [thread:$0]  %s1966, 256, %s7, [#allocation7], 128, 128, 8
    $region53: #{tpu_custom_call.1} parent=1 // pred_fallthru
      _
    // Predicated region
    $region54: #{tpu_custom_call.1} parent=1 // pred_check
      _
    $region55: #{tpu_custom_call.1} parent=1 // pred_check_branch
      %1973 = sbr.rel (0) target = $region57
    $region56: #{tpu_custom_call.1} parent=1 // pred_region
      %1974 = dma.done [#allocation7], 256
    $region57: #{tpu_custom_call.1} parent=1 // pred_fallthru
      _
    %1975 = vsyncpa [#allocation6], 1
    %1976 = vsyncpa [#allocation9], 1
    %1977 = vsyncpa [#allocation12], 1
    %1978 = vsyncpa [#allocation7], 1

</llo_original>
